<compile_context>
chip_gen: v7x
topology: tpu7x:2x2x1
jax: 0.10.0
libtpu: 0.0.40
codegen_flags: <defaults>
</compile_context>

<pallas_src>
import functools

import jax
import jax.numpy as jnp
from jax.experimental import pallas as pl
from jax.experimental.pallas import tpu as pltpu


# ----------------------------- Pallas kernel ------------------------------- #
def _mionet_kernel(
    x_ref,                         # (D, TB)    f32, feature-major, batch on lanes
    w1_ref, b1_ref,                # (3H, D) f32, (3H, 1) f32   fused layer 1
    w2_ref, b2_ref,                # (3H, 3H) mxu-dtype, (3H, 1) f32  block-diag layer 2
    w3_ref, b3_ref,                # (3P, 3H) mxu-dtype, (3P, 1) f32  block-diag layer 3
    scale_ref, trasl_ref,          # (1, 1) f32 in SMEM
    out_ref,                       # (1, TB)    f32, lane-dense
    *,
    num_nets,                      # static
):
    x = x_ref[...]                                   # (D, TB) f32
    d = x_ref.shape[0]
    mxu_dtype = w2_ref.dtype

    # ---- fused layer 1: contraction depth <= D (1-3) -> VPU broadcast FMAs ----
    w1 = w1_ref[...]                                 # (3H, D)
    acc = b1_ref[...]                                # (3H, 1) -> lane broadcast
    for c in range(d):                               # each x row sliced exactly once
        acc = acc + w1[:, c:c + 1] * x[c:c + 1, :]   # (3H,1)*(1,TB) -> (3H,TB)
    h = jnp.tanh(acc)                                # (3H, TB) f32 (EUP)

    # ---- fused layer 2: ONE block-diagonal MXU matmul for all three nets ----
    h = jnp.tanh(
        jnp.dot(w2_ref[...], h.astype(mxu_dtype),
                preferred_element_type=jnp.float32)
        + b2_ref[...]
    )                                                # (3H, TB) f32

    # ---- fused layer 3 ----
    o = (
        jnp.dot(w3_ref[...], h.astype(mxu_dtype),
                preferred_element_type=jnp.float32)
        + b3_ref[...]
    )                                                # (3P, TB) f32

    # aggregator '*' over the dstack axis == product across the per-net slices,
    # accumulated incrementally (single live (P, TB) accumulator).
    p = o.shape[0] // num_nets
    prod = o[0:p]
    for i in range(1, num_nets):
        prod = prod * o[i * p:(i + 1) * p]           # (P, TB)

    # reduction '+' over the output-feature axis -> lane-dense (1, TB)
    red = jnp.sum(prod, axis=0, keepdims=True)

    scale = scale_ref[0, 0]
    trasl = trasl_ref[0, 0]
    out_ref[...] = red * scale + trasl               # unmasked lane-dense store


# ------------------------ Parameter packing (wrapper) ----------------------- #
def pack_mionet_params(params, indices, n_features, mxu_dtype=jnp.bfloat16):
    """Pack the 3 per-net parameter sets into fused/block-diagonal slabs.

    Do this ONCE outside the hot path.  Weights are stored (out, in); biases
    (out, 1).  `mxu_dtype` applies only to the layer-2/3 matmul operands; all
    biases, layer-1 weights and the VPU/EUP math stay in float32.
    """
    net_names = [f"net{i + 1}" for i in range(len(indices))]
    for idx_list in indices:
        assert all(0 <= c < n_features for c in idx_list), "index out of range for input width"

    h_sizes = [params[n]["w2"].shape[0] for n in net_names]
    p_sizes = [params[n]["w3"].shape[0] for n in net_names]
    assert len(set(p_sizes)) == 1, "all nets must share the same output dimension"
    p = p_sizes[0]
    h_tot = sum(h_sizes)
    p_tot = p * len(net_names)

    w1_pack = jnp.zeros((h_tot, n_features), jnp.float32)
    w2_blk = jnp.zeros((h_tot, h_tot), jnp.float32)
    w3_blk = jnp.zeros((p_tot, h_tot), jnp.float32)
    b1_cat = jnp.concatenate([params[n]["b1"] for n in net_names], axis=0)
    b2_cat = jnp.concatenate([params[n]["b2"] for n in net_names], axis=0)
    b3_cat = jnp.concatenate([params[n]["b3"] for n in net_names], axis=0)

    ho = 0
    for i, (name, idx_list) in enumerate(zip(net_names, indices)):
        hi = h_sizes[i]
        w1 = params[name]["w1"]                       # (hi, len(idx_list))
        for dcol, col in enumerate(idx_list):
            # .add handles a column being referenced more than once by one net
            w1_pack = w1_pack.at[ho:ho + hi, col].add(w1[:, dcol])
        w2_blk = w2_blk.at[ho:ho + hi, ho:ho + hi].set(params[name]["w2"])
        w3_blk = w3_blk.at[i * p:(i + 1) * p, ho:ho + hi].set(params[name]["w3"])
        ho += hi

    return {
        "num_nets": len(net_names),
        "w1": w1_pack,
        "b1": b1_cat,
        "w2": w2_blk.astype(mxu_dtype),
        "b2": b2_cat,
        "w3": w3_blk.astype(mxu_dtype),
        "b3": b3_cat,
        "scale": params["scale"].reshape(1, 1).astype(jnp.float32),
        "trasl": params["trasl"].reshape(1, 1).astype(jnp.float32),
    }


def _vmem_limit_bytes(d, tile_batch, weight_args):
    """Generous scoped-VMEM estimate: blocks + resident weights + intermediates."""
    def padded(a):
        r = -(-a.shape[0] // 16) * 16
        c = -(-a.shape[1] // 128) * 128
        return r * c * a.dtype.itemsize

    blk = 2 * 2 * 8 * tile_batch * 4                       # double-buffered x + out (sublane-padded)
    wbytes = 2 * sum(padded(a) for a in weight_args)       # default double-buffered residency
    h_tot = weight_args[2].shape[0]                        # w2 is (3H, 3H)
    p_tot = weight_args[4].shape[0]                        # w3 is (3P, 3H)
    interm = (8 * h_tot + 4 * p_tot) * tile_batch * 4      # live f32/bf16 slabs, 2x safety
    return int(blk + wbytes + interm + (8 << 20))          # + 8 MiB headroom


# ------------------------------ JAX wrapper -------------------------------- #
def mionet_forward(x, packed, *, tile_batch=2048, feature_major_input=False):
    """x: (N, D) float32 (or (D, N) if feature_major_input). Returns (N, 1) f32."""
    assert tile_batch % 128 == 0, "tile_batch must be a multiple of 128 (lane width)"

    if feature_major_input:
        d, n = x.shape
        xt = x
    else:
        n, d = x.shape
        xt = x.T                                     # one cheap pre-pass; kernel is compute-bound

    # Pad the batch so the grid covers it exactly (partial tile -> padding + final slice).
    n_blocks = pl.cdiv(n, tile_batch)
    n_pad = n_blocks * tile_batch
    if n_pad != n:
        xt = jnp.pad(xt, ((0, 0), (0, n_pad - n)))

    weight_keys = ("w1", "b1", "w2", "b2", "w3", "b3")
    weight_args = [packed[k] for k in weight_keys]
    # grid-invariant blocks (constant index_map) -> stay resident in VMEM
    weight_specs = [pl.BlockSpec(a.shape, lambda i: (0, 0)) for a in weight_args]
    smem_spec = pl.BlockSpec(memory_space=pltpu.MemorySpace.SMEM)

    kernel = functools.partial(_mionet_kernel, num_nets=packed["num_nets"])

    out_t = pl.pallas_call(
        kernel,
        out_shape=jax.ShapeDtypeStruct((1, n_pad), jnp.float32),
        grid=(n_blocks,),
        in_specs=(
            [pl.BlockSpec((d, tile_batch), lambda i: (0, i))]   # single (D, TB) input block
            + weight_specs
            + [smem_spec, smem_spec]                             # scale, trasl in SMEM
        ),
        out_specs=pl.BlockSpec((1, tile_batch), lambda i: (0, i)),
        compiler_params=pltpu.CompilerParams(
            dimension_semantics=("parallel",),                   # batch axis -> both v7x TCs
            vmem_limit_bytes=_vmem_limit_bytes(d, tile_batch, weight_args),
        ),
    )(xt, *weight_args, packed["scale"], packed["trasl"])

    # (1, n_pad) -> drop padding -> (N, 1)
    return out_t[0, :n].reshape(n, 1)


# --------------------------- Parameter creation ----------------------------- #
def make_params(key, in_dims, hidden, out_dim):
    """Deterministic init of the 3 FeedForward nets + scale/translation.

    Weights are stored (out_features, in_features); biases (out, 1).
    """
    params = {}
    for idx, d_in in enumerate(in_dims):
        key, k1, k2, k3 = jax.random.split(key, 4)
        params[f"net{idx + 1}"] = {
            "w1": jax.random.normal(k1, (hidden, d_in), jnp.float32) * 0.5,
            "b1": jnp.full((hidden, 1), 0.01, jnp.float32),
            "w2": jax.random.normal(k2, (hidden, hidden), jnp.float32) * 0.2,
            "b2": jnp.full((hidden, 1), 0.01, jnp.float32),
            "w3": jax.random.normal(k3, (out_dim, hidden), jnp.float32) * 0.2,
            "b3": jnp.full((out_dim, 1), 0.01, jnp.float32),
        }
    params["scale"] = jnp.ones((1, 1), jnp.float32)   # scale / translation init to 1.0
    params["trasl"] = jnp.ones((1, 1), jnp.float32)
    return params


# ------------------------------ Reference ----------------------------------- #
def mionet_reference(x, params, indices):
    def mlp(xi, p):
        h = jnp.tanh(xi @ p["w1"].T + p["b1"].T)
        h = jnp.tanh(h @ p["w2"].T + p["b2"].T)
        return h @ p["w3"].T + p["b3"].T

    outs = [
        mlp(x[:, list(indices[0])], params["net1"]),
        mlp(x[:, list(indices[1])], params["net2"]),
        mlp(x[:, list(indices[2])], params["net3"]),
    ]
    stacked = jnp.stack(outs, axis=2)            # dstack -> (N, P, 3)
    aggregated = jnp.prod(stacked, axis=2)       # '*' over dim=2
    reduced = jnp.sum(aggregated, axis=-1)       # '+' over dim=-1
    out = reduced.reshape(-1, 1)
    out = out * params["scale"][0, 0]
    out = out + params["trasl"][0, 0]
    return out


# --------------------------------- main -------------------------------------- #
if __name__ == "__main__":
    # Full f32 precision in the XLA reference matmuls for a tight comparison.
    jax.config.update("jax_default_matmul_precision", "highest")

    # Small shapes: batch=300 (exercises padding / multi-step grid),
    # 3 input variables ('x','y','z'), hidden=32, out=16.
    N, HIDDEN, OUT = 300, 32, 16
    indices = ([0], [0, 1], [2])                 # branch1: x, branch2: (x,y), trunk: z
    in_dims = [len(idx) for idx in indices]

    key = jax.random.PRNGKey(0)
    key, kx = jax.random.split(key)
    x = jax.random.uniform(kx, (N, 3), jnp.float32)

    params = make_params(key, in_dims, HIDDEN, OUT)
    ref = mionet_reference(x, params, indices)

    # tile_batch=128 here so the small demo still produces a multi-step grid;
    # for production batches leave the default (2048) or sweep 2048-8192.
    TB_DEMO = 128

    # 1) Exact-semantics path: f32 MXU operands, tight tolerance vs f32 reference.
    packed_f32 = pack_mionet_params(params, indices, n_features=3, mxu_dtype=jnp.float32)
    out_f32 = jax.block_until_ready(mionet_forward(x, packed_f32, tile_batch=TB_DEMO))
    assert out_f32.shape == (N, 1)
    assert jnp.allclose(out_f32, ref, rtol=1e-3, atol=1e-3), (
        f"f32-MXU max abs diff = {jnp.max(jnp.abs(out_f32 - ref))}"
    )

    # 2) Production path: bf16 MXU operands with f32 accumulation.
    #    bf16 rounding of the K=32-per-block contractions gives ~1e-3 level
    #    per-element error that compounds through two layers, the product and
    #    the sum, so it is validated at a bf16-appropriate tolerance.
    packed_bf16 = pack_mionet_params(params, indices, n_features=3, mxu_dtype=jnp.bfloat16)
    out_bf16 = jax.block_until_ready(mionet_forward(x, packed_bf16, tile_batch=TB_DEMO))
    assert out_bf16.shape == (N, 1)
    assert jnp.allclose(out_bf16, ref, rtol=3e-2, atol=3e-2), (
        f"bf16-MXU max abs diff = {jnp.max(jnp.abs(out_bf16 - ref))}"
    )

    print("KERNEL_OK")
</pallas_src>

<mosaic_0001>
module attributes {stable_mosaic.version = 11 : i64} {
  func.func @_mionet_kernel(%arg0: i32, %arg1: memref<3x128xf32, #tpu.memory_space<vmem>>, %arg2: memref<96x3xf32, #tpu.memory_space<vmem>>, %arg3: memref<96x1xf32, #tpu.memory_space<vmem>>, %arg4: memref<96x96xf32, #tpu.memory_space<vmem>>, %arg5: memref<96x1xf32, #tpu.memory_space<vmem>>, %arg6: memref<48x96xf32, #tpu.memory_space<vmem>>, %arg7: memref<48x1xf32, #tpu.memory_space<vmem>>, %arg8: memref<1x1xf32, #tpu.memory_space<smem>>, %arg9: memref<1x1xf32, #tpu.memory_space<smem>>, %arg10: memref<1x128xf32, #tpu.memory_space<vmem>>) attributes {dimension_semantics = [#tpu.dimension_semantics<parallel>], iteration_bounds = array<i64: 3>, scalar_prefetch = 0 : i64, scratch_operands = 0 : i64, tpu.core_type = #tpu.core_type<tc>, window_params = [{transform_indices = @transform_0, window_bounds = array<i64: 3, 128>}, {pipeline_mode = #tpu.pipeline_mode<synchronous>, transform_indices = @transform_1, window_bounds = array<i64: 96, 3>}, {pipeline_mode = #tpu.pipeline_mode<synchronous>, transform_indices = @transform_2, window_bounds = array<i64: 96, 1>}, {pipeline_mode = #tpu.pipeline_mode<synchronous>, transform_indices = @transform_3, window_bounds = array<i64: 96, 96>}, {pipeline_mode = #tpu.pipeline_mode<synchronous>, transform_indices = @transform_4, window_bounds = array<i64: 96, 1>}, {pipeline_mode = #tpu.pipeline_mode<synchronous>, transform_indices = @transform_5, window_bounds = array<i64: 48, 96>}, {pipeline_mode = #tpu.pipeline_mode<synchronous>, transform_indices = @transform_6, window_bounds = array<i64: 48, 1>}, {transform_indices = @transform_7, window_bounds = array<i64: 1, 1>}, {transform_indices = @transform_8, window_bounds = array<i64: 1, 1>}, {transform_indices = @transform_9, window_bounds = array<i64: 1, 128>}]} {
    %c0 = arith.constant 0 : index
    %c0_0 = arith.constant 0 : index
    %0 = vector.load %arg1[%c0, %c0_0] : memref<3x128xf32, #tpu.memory_space<vmem>>, vector<3x128xf32>
    %c0_1 = arith.constant 0 : index
    %c0_2 = arith.constant 0 : index
    %1 = vector.load %arg2[%c0_1, %c0_2] : memref<96x3xf32, #tpu.memory_space<vmem>>, vector<96x3xf32>
    %c0_3 = arith.constant 0 : index
    %c0_4 = arith.constant 0 : index
    %2 = vector.load %arg3[%c0_3, %c0_4] : memref<96x1xf32, #tpu.memory_space<vmem>>, vector<96x1xf32>
    %3 = vector.extract_strided_slice %1 {offsets = [0, 0], sizes = [96, 1], strides = [1, 1]} : vector<96x3xf32> to vector<96x1xf32>
    %4 = vector.extract_strided_slice %0 {offsets = [0, 0], sizes = [1, 128], strides = [1, 1]} : vector<3x128xf32> to vector<1x128xf32>
    %5 = vector.broadcast %3 : vector<96x1xf32> to vector<96x128xf32>
    %6 = vector.broadcast %4 : vector<1x128xf32> to vector<96x128xf32>
    %7 = arith.mulf %5, %6 : vector<96x128xf32>
    %8 = vector.broadcast %2 : vector<96x1xf32> to vector<96x128xf32>
    %9 = arith.addf %8, %7 : vector<96x128xf32>
    %10 = vector.extract_strided_slice %1 {offsets = [0, 1], sizes = [96, 1], strides = [1, 1]} : vector<96x3xf32> to vector<96x1xf32>
    %11 = vector.extract_strided_slice %0 {offsets = [1, 0], sizes = [1, 128], strides = [1, 1]} : vector<3x128xf32> to vector<1x128xf32>
    %12 = vector.broadcast %10 : vector<96x1xf32> to vector<96x128xf32>
    %13 = vector.broadcast %11 : vector<1x128xf32> to vector<96x128xf32>
    %14 = arith.mulf %12, %13 : vector<96x128xf32>
    %15 = arith.addf %9, %14 : vector<96x128xf32>
    %16 = vector.extract_strided_slice %1 {offsets = [0, 2], sizes = [96, 1], strides = [1, 1]} : vector<96x3xf32> to vector<96x1xf32>
    %17 = vector.extract_strided_slice %0 {offsets = [2, 0], sizes = [1, 128], strides = [1, 1]} : vector<3x128xf32> to vector<1x128xf32>
    %18 = vector.broadcast %16 : vector<96x1xf32> to vector<96x128xf32>
    %19 = vector.broadcast %17 : vector<1x128xf32> to vector<96x128xf32>
    %20 = arith.mulf %18, %19 : vector<96x128xf32>
    %21 = arith.addf %15, %20 : vector<96x128xf32>
    %22 = math.tanh %21 : vector<96x128xf32>
    %c0_5 = arith.constant 0 : index
    %c0_6 = arith.constant 0 : index
    %23 = vector.load %arg4[%c0_5, %c0_6] : memref<96x96xf32, #tpu.memory_space<vmem>>, vector<96x96xf32>
    %cst = arith.constant dense<0.000000e+00> : vector<96x128xf32>
    %24 = tpu.matmul %23, %22, %cst {dimension_numbers = #tpu.dot_dimension_numbers<[1], [0], [0], [1], [0, 0, 1, 1], [], []>, precision = #tpu.contract_precision<fp32>} : vector<96x96xf32>, vector<96x128xf32>, vector<96x128xf32> -> vector<96x128xf32>
    %c0_7 = arith.constant 0 : index
    %c0_8 = arith.constant 0 : index
    %25 = vector.load %arg5[%c0_7, %c0_8] : memref<96x1xf32, #tpu.memory_space<vmem>>, vector<96x1xf32>
    %26 = vector.broadcast %25 : vector<96x1xf32> to vector<96x128xf32>
    %27 = arith.addf %24, %26 : vector<96x128xf32>
    %28 = math.tanh %27 : vector<96x128xf32>
    %c0_9 = arith.constant 0 : index
    %c0_10 = arith.constant 0 : index
    %29 = vector.load %arg6[%c0_9, %c0_10] : memref<48x96xf32, #tpu.memory_space<vmem>>, vector<48x96xf32>
    %cst_11 = arith.constant dense<0.000000e+00> : vector<48x128xf32>
    %30 = tpu.matmul %29, %28, %cst_11 {dimension_numbers = #tpu.dot_dimension_numbers<[1], [0], [0], [1], [0, 0, 1, 1], [], []>, precision = #tpu.contract_precision<fp32>} : vector<48x96xf32>, vector<96x128xf32>, vector<48x128xf32> -> vector<48x128xf32>
    %c0_12 = arith.constant 0 : index
    %c0_13 = arith.constant 0 : index
    %31 = vector.load %arg7[%c0_12, %c0_13] : memref<48x1xf32, #tpu.memory_space<vmem>>, vector<48x1xf32>
    %32 = vector.broadcast %31 : vector<48x1xf32> to vector<48x128xf32>
    %33 = arith.addf %30, %32 : vector<48x128xf32>
    %34 = vector.extract_strided_slice %33 {offsets = [0, 0], sizes = [16, 128], strides = [1, 1]} : vector<48x128xf32> to vector<16x128xf32>
    %35 = vector.extract_strided_slice %33 {offsets = [16, 0], sizes = [16, 128], strides = [1, 1]} : vector<48x128xf32> to vector<16x128xf32>
    %36 = arith.mulf %34, %35 : vector<16x128xf32>
    %37 = vector.extract_strided_slice %33 {offsets = [32, 0], sizes = [16, 128], strides = [1, 1]} : vector<48x128xf32> to vector<16x128xf32>
    %38 = arith.mulf %36, %37 : vector<16x128xf32>
    %cst_14 = arith.constant dense<0.000000e+00> : vector<128xf32>
    %39 = vector.multi_reduction <add>, %38, %cst_14 [0] : vector<16x128xf32> to vector<128xf32>
    %40 = vector.shape_cast %39 : vector<128xf32> to vector<1x128xf32>
    %c0_15 = arith.constant 0 : index
    %c0_16 = arith.constant 0 : index
    %41 = memref.load %arg8[%c0_15, %c0_16] : memref<1x1xf32, #tpu.memory_space<smem>>
    %c0_17 = arith.constant 0 : index
    %c0_18 = arith.constant 0 : index
    %42 = memref.load %arg9[%c0_17, %c0_18] : memref<1x1xf32, #tpu.memory_space<smem>>
    %43 = vector.broadcast %41 : f32 to vector<1x128xf32>
    %44 = arith.mulf %40, %43 : vector<1x128xf32>
    %45 = vector.broadcast %42 : f32 to vector<1x128xf32>
    %46 = arith.addf %44, %45 : vector<1x128xf32>
    %c0_19 = arith.constant 0 : index
    %c0_20 = arith.constant 0 : index
    %47 = vector.load %arg10[%c0_19, %c0_20] : memref<1x128xf32, #tpu.memory_space<vmem>>, vector<1x128xf32>
    tpu.vector_store %arg10[%c0_19, %c0_20], %46 {strides = array<i32>} : memref<1x128xf32, #tpu.memory_space<vmem>>, vector<1x128xf32>,
    return
  }
  func.func @transform_0(%arg0: i32) -> (i32, i32) {
    %c0_i32 = arith.constant 0 : i32
    %c0_i32_0 = arith.constant 0 : i32
    return %c0_i32, %arg0 : i32, i32
  }
  func.func @transform_1(%arg0: i32) -> (i32, i32) {
    %c0_i32 = arith.constant 0 : i32
    %c0_i32_0 = arith.constant 0 : i32
    %c0_i32_1 = arith.constant 0 : i32
    return %c0_i32, %c0_i32_0 : i32, i32
  }
  func.func @transform_2(%arg0: i32) -> (i32, i32) {
    %c0_i32 = arith.constant 0 : i32
    %c0_i32_0 = arith.constant 0 : i32
    %c0_i32_1 = arith.constant 0 : i32
    return %c0_i32, %c0_i32_0 : i32, i32
  }
  func.func @transform_3(%arg0: i32) -> (i32, i32) {
    %c0_i32 = arith.constant 0 : i32
    %c0_i32_0 = arith.constant 0 : i32
    %c0_i32_1 = arith.constant 0 : i32
    return %c0_i32, %c0_i32_0 : i32, i32
  }
  func.func @transform_4(%arg0: i32) -> (i32, i32) {
    %c0_i32 = arith.constant 0 : i32
    %c0_i32_0 = arith.constant 0 : i32
    %c0_i32_1 = arith.constant 0 : i32
    return %c0_i32, %c0_i32_0 : i32, i32
  }
  func.func @transform_5(%arg0: i32) -> (i32, i32) {
    %c0_i32 = arith.constant 0 : i32
    %c0_i32_0 = arith.constant 0 : i32
    %c0_i32_1 = arith.constant 0 : i32
    return %c0_i32, %c0_i32_0 : i32, i32
  }
  func.func @transform_6(%arg0: i32) -> (i32, i32) {
    %c0_i32 = arith.constant 0 : i32
    %c0_i32_0 = arith.constant 0 : i32
    %c0_i32_1 = arith.constant 0 : i32
    return %c0_i32, %c0_i32_0 : i32, i32
  }
  func.func @transform_7(%arg0: i32) -> (i32, i32) {
    %c0_i32 = arith.constant 0 : i32
    %c0_i32_0 = arith.constant 0 : i32
    %c0_i32_1 = arith.constant 0 : i32
    return %c0_i32, %c0_i32_0 : i32, i32
  }
  func.func @transform_8(%arg0: i32) -> (i32, i32) {
    %c0_i32 = arith.constant 0 : i32
    %c0_i32_0 = arith.constant 0 : i32
    %c0_i32_1 = arith.constant 0 : i32
    return %c0_i32, %c0_i32_0 : i32, i32
  }
  func.func @transform_9(%arg0: i32) -> (i32, i32) {
    %c0_i32 = arith.constant 0 : i32
    %c0_i32_0 = arith.constant 0 : i32
    return %c0_i32, %arg0 : i32, i32
  }
}

</mosaic_0001>

<llo_original>
// kernel: tpu_custom_call.1
$region0: #{tpu_custom_call.1}
  #allocation0 [shape = 'u32[]', space=smem, size = 0x4, offset = 0x4, fixed_abs, tag = 'smem constant byte address 0x4 - core index']
  #allocation1 [shape = 'u32[144,128]{1,0:T(1,128)}', space=vmem, size = 0x12000, scoped, tag = 'internal scratch']
  #allocation2 [shape = 'f32[1,1]{1,0:T(1,128)S(6)}', space=smem, size = 0x200, scoped, tag = 'scoped memory for tpu_custom_call.1']
  #allocation3 [shape = 'f32[1,1]{1,0:T(1,128)S(6)}', space=smem, size = 0x200, scoped, tag = 'scoped memory for tpu_custom_call.1']
  %s0 = inlined_call_operand.vmem [shape: f32[3,384], index: 0, kind: input, shape index: {}]
  %s1 = inlined_call_operand.vmem [shape: f32[96,3], index: 1, kind: input, shape index: {}]
  %s2 = inlined_call_operand.vmem [shape: f32[96,1], index: 2, kind: input, shape index: {}]
  %s3 = inlined_call_operand.vmem [shape: f32[96,96], index: 3, kind: input, shape index: {}]
  %s4 = inlined_call_operand.vmem [shape: f32[96,1], index: 4, kind: input, shape index: {}]
  %s5 = inlined_call_operand.vmem [shape: f32[48,96], index: 5, kind: input, shape index: {}]
  %s6 = inlined_call_operand.vmem [shape: f32[48,1], index: 6, kind: input, shape index: {}]
  %s7 = inlined_call_operand.<no memory space> [shape: f32[1,1], index: 7, kind: input, shape index: {}]
  %s8 = inlined_call_operand.<no memory space> [shape: f32[1,1], index: 8, kind: input, shape index: {}]
  %s9 = inlined_call_operand.hbm [shape: f32[1,384], index: 9, kind: output, shape index: {}]
  %s10 = sld [smem:[#allocation0]]
  $region69: #{tpu_custom_call.1} parent=0
    _
  %s12 = ssub.s32 1, %s10
  %s13 = scalar_select 0, %s12, %s10
  %14 = sst [smem:[#allocation2]] %s7
  %15 = sst [smem:[#allocation3]] %s8
  $region1: #{tpu_custom_call.1} parent=0
    #allocation4 [shape = 'u8[1024]{0}', space=vmem, size = 0x400, scoped, tag = 'output window, operand 0']
    #allocation5 [shape = 's32[2]{0}', space=sflag, size = 0x8, scoped, tag = 'scoped memory for tpu_custom_call.1']
    %16 = vsyncpa [#allocation5], 0
    %s17 = scalar_lea.sflag [#allocation5], 1
    %18 = vsyncpa %s17, 0
    loop: start=0, step=1, limit=5
    $region2: #{tpu_custom_call.1} parent=1 // loop_pre_header
      _
    $region3: #{tpu_custom_call.1} parent=1 // loop_header
      %s20 = sphi 0, %s24
      %p21 = scmp.ge.s32.totalorder %s20, 5
      %s30 = sphi 0, %s32
      %s33 = sphi 0, %s30
      %s34 = sphi 0, %s33
      %s50 = sphi 0, %s34
      %s54 = sphi 0, %s54
      %s56 = sphi 0, %s54
      %s57 = sphi 0, %s56
      %s71 = sphi 0, %s57
      %s75 = sphi 0, %s75
      %s77 = sphi 0, %s75
      %s78 = sphi 0, %s77
      %s92 = sphi 0, %s78
      %s96 = sphi 0, %s96
      %s98 = sphi 0, %s96
      %s99 = sphi 0, %s98
      %s113 = sphi 0, %s99
      %s117 = sphi 0, %s117
      %s119 = sphi 0, %s117
      %s120 = sphi 0, %s119
      %s134 = sphi 0, %s120
      %s138 = sphi 0, %s138
      %s140 = sphi 0, %s138
      %s141 = sphi 0, %s140
      %s155 = sphi 0, %s141
      %s159 = sphi 0, %s159
      %s161 = sphi 0, %s159
      %s162 = sphi 0, %s161
      %s176 = sphi 0, %s162
      %s180 = sphi 0, %s180
      %s182 = sphi 0, %s180
      %s183 = sphi 0, %s182
      %s197 = sphi 0, %s183
      %s201 = sphi 0, %s201
      %s203 = sphi 0, %s201
      %s204 = sphi 0, %s203
      %s218 = sphi 0, %s204
      %s224 = sphi 0, %s226
      %s227 = sphi 0, %s224
      %s228 = sphi 0, %s227
      %s244 = sphi 0, %s228
    $region4: #{tpu_custom_call.1} parent=1 // loop_header_branch
      %23 = sbr.rel (%p21) target = $region8
    $region5: #{tpu_custom_call.1} parent=1 // loop_body
      %s25 = ssub.s32 %s20, 1
      %s26 = ssub.s32 %s20, 2
      %s27 = sadd.s32 %s20, 1
      %s28 = ssub.s32 %s20, %s27
      %p29 = scmp.eq.s32.totalorder %s28, 0
      %s31 = sadd.s32 %s30, 1
      %s32 = scalar_select %p29, %s30, %s31
      %p35 = pneg %p29
      %p36 = scmp.eq.s32.totalorder %s20, 2
      %p37 = por %p35, %p36
      %p38 = scmp.ne.s32.totalorder %s30, %s33
      %p39 = scmp.eq.s32.totalorder %s20, 0
      %p40 = por %p38, %p39
      %p41 = scmp.ne.s32.totalorder %s30, %s33
      %p42 = scmp.eq.s32.totalorder %s25, 2
      %p43 = por %p41, %p42
      %p44 = scmp.ne.s32.totalorder %s33, %s34
      %p45 = scmp.eq.s32.totalorder %s25, 0
      %p46 = por %p44, %p45
      %p47 = scmp.ne.s32.totalorder %s33, %s34
      %p48 = scmp.eq.s32.totalorder %s26, 2
      %p49 = por %p47, %p48
      %p51 = scmp.ne.s32.totalorder %s34, %s50
      %p52 = scmp.eq.s32.totalorder %s26, 0
      %p53 = por %p51, %p52
      %s55 = sadd.s32 %s54, 1
      %p58 = scmp.eq.s32.totalorder %s20, 2
      %p59 = scmp.ne.s32.totalorder %s54, %s56
      %p60 = scmp.eq.s32.totalorder %s20, 0
      %p61 = por %p59, %p60
      %p62 = scmp.ne.s32.totalorder %s54, %s56
      %p63 = scmp.eq.s32.totalorder %s25, 2
      %p64 = por %p62, %p63
      %p65 = scmp.ne.s32.totalorder %s56, %s57
      %p66 = scmp.eq.s32.totalorder %s25, 0
      %p67 = por %p65, %p66
      %p68 = scmp.ne.s32.totalorder %s56, %s57
      %p69 = scmp.eq.s32.totalorder %s26, 2
      %p70 = por %p68, %p69
      %p72 = scmp.ne.s32.totalorder %s57, %s71
      %p73 = scmp.eq.s32.totalorder %s26, 0
      %p74 = por %p72, %p73
      %s76 = sadd.s32 %s75, 1
      %p79 = scmp.eq.s32.totalorder %s20, 2
      %p80 = scmp.ne.s32.totalorder %s75, %s77
      %p81 = scmp.eq.s32.totalorder %s20, 0
      %p82 = por %p80, %p81
      %p83 = scmp.ne.s32.totalorder %s75, %s77
      %p84 = scmp.eq.s32.totalorder %s25, 2
      %p85 = por %p83, %p84
      %p86 = scmp.ne.s32.totalorder %s77, %s78
      %p87 = scmp.eq.s32.totalorder %s25, 0
      %p88 = por %p86, %p87
      %p89 = scmp.ne.s32.totalorder %s77, %s78
      %p90 = scmp.eq.s32.totalorder %s26, 2
      %p91 = por %p89, %p90
      %p93 = scmp.ne.s32.totalorder %s78, %s92
      %p94 = scmp.eq.s32.totalorder %s26, 0
      %p95 = por %p93, %p94
      %s97 = sadd.s32 %s96, 1
      %p100 = scmp.eq.s32.totalorder %s20, 2
      %p101 = scmp.ne.s32.totalorder %s96, %s98
      %p102 = scmp.eq.s32.totalorder %s20, 0
      %p103 = por %p101, %p102
      %p104 = scmp.ne.s32.totalorder %s96, %s98
      %p105 = scmp.eq.s32.totalorder %s25, 2
      %p106 = por %p104, %p105
      %p107 = scmp.ne.s32.totalorder %s98, %s99
      %p108 = scmp.eq.s32.totalorder %s25, 0
      %p109 = por %p107, %p108
      %p110 = scmp.ne.s32.totalorder %s98, %s99
      %p111 = scmp.eq.s32.totalorder %s26, 2
      %p112 = por %p110, %p111
      %p114 = scmp.ne.s32.totalorder %s99, %s113
      %p115 = scmp.eq.s32.totalorder %s26, 0
      %p116 = por %p114, %p115
      %s118 = sadd.s32 %s117, 1
      %p121 = scmp.eq.s32.totalorder %s20, 2
      %p122 = scmp.ne.s32.totalorder %s117, %s119
      %p123 = scmp.eq.s32.totalorder %s20, 0
      %p124 = por %p122, %p123
      %p125 = scmp.ne.s32.totalorder %s117, %s119
      %p126 = scmp.eq.s32.totalorder %s25, 2
      %p127 = por %p125, %p126
      %p128 = scmp.ne.s32.totalorder %s119, %s120
      %p129 = scmp.eq.s32.totalorder %s25, 0
      %p130 = por %p128, %p129
      %p131 = scmp.ne.s32.totalorder %s119, %s120
      %p132 = scmp.eq.s32.totalorder %s26, 2
      %p133 = por %p131, %p132
      %p135 = scmp.ne.s32.totalorder %s120, %s134
      %p136 = scmp.eq.s32.totalorder %s26, 0
      %p137 = por %p135, %p136
      %s139 = sadd.s32 %s138, 1
      %p142 = scmp.eq.s32.totalorder %s20, 2
      %p143 = scmp.ne.s32.totalorder %s138, %s140
      %p144 = scmp.eq.s32.totalorder %s20, 0
      %p145 = por %p143, %p144
      %p146 = scmp.ne.s32.totalorder %s138, %s140
      %p147 = scmp.eq.s32.totalorder %s25, 2
      %p148 = por %p146, %p147
      %p149 = scmp.ne.s32.totalorder %s140, %s141
      %p150 = scmp.eq.s32.totalorder %s25, 0
      %p151 = por %p149, %p150
      %p152 = scmp.ne.s32.totalorder %s140, %s141
      %p153 = scmp.eq.s32.totalorder %s26, 2
      %p154 = por %p152, %p153
      %p156 = scmp.ne.s32.totalorder %s141, %s155
      %p157 = scmp.eq.s32.totalorder %s26, 0
      %p158 = por %p156, %p157
      %s160 = sadd.s32 %s159, 1
      %p163 = scmp.eq.s32.totalorder %s20, 2
      %p164 = scmp.ne.s32.totalorder %s159, %s161
      %p165 = scmp.eq.s32.totalorder %s20, 0
      %p166 = por %p164, %p165
      %p167 = scmp.ne.s32.totalorder %s159, %s161
      %p168 = scmp.eq.s32.totalorder %s25, 2
      %p169 = por %p167, %p168
      %p170 = scmp.ne.s32.totalorder %s161, %s162
      %p171 = scmp.eq.s32.totalorder %s25, 0
      %p172 = por %p170, %p171
      %p173 = scmp.ne.s32.totalorder %s161, %s162
      %p174 = scmp.eq.s32.totalorder %s26, 2
      %p175 = por %p173, %p174
      %p177 = scmp.ne.s32.totalorder %s162, %s176
      %p178 = scmp.eq.s32.totalorder %s26, 0
      %p179 = por %p177, %p178
      %s181 = sadd.s32 %s180, 1
      %p184 = scmp.eq.s32.totalorder %s20, 2
      %p185 = scmp.ne.s32.totalorder %s180, %s182
      %p186 = scmp.eq.s32.totalorder %s20, 0
      %p187 = por %p185, %p186
      %p188 = scmp.ne.s32.totalorder %s180, %s182
      %p189 = scmp.eq.s32.totalorder %s25, 2
      %p190 = por %p188, %p189
      %p191 = scmp.ne.s32.totalorder %s182, %s183
      %p192 = scmp.eq.s32.totalorder %s25, 0
      %p193 = por %p191, %p192
      %p194 = scmp.ne.s32.totalorder %s182, %s183
      %p195 = scmp.eq.s32.totalorder %s26, 2
      %p196 = por %p194, %p195
      %p198 = scmp.ne.s32.totalorder %s183, %s197
      %p199 = scmp.eq.s32.totalorder %s26, 0
      %p200 = por %p198, %p199
      %s202 = sadd.s32 %s201, 1
      %p205 = scmp.eq.s32.totalorder %s20, 2
      %p206 = scmp.ne.s32.totalorder %s201, %s203
      %p207 = scmp.eq.s32.totalorder %s20, 0
      %p208 = por %p206, %p207
      %p209 = scmp.ne.s32.totalorder %s201, %s203
      %p210 = scmp.eq.s32.totalorder %s25, 2
      %p211 = por %p209, %p210
      %p212 = scmp.ne.s32.totalorder %s203, %s204
      %p213 = scmp.eq.s32.totalorder %s25, 0
      %p214 = por %p212, %p213
      %p215 = scmp.ne.s32.totalorder %s203, %s204
      %p216 = scmp.eq.s32.totalorder %s26, 2
      %p217 = por %p215, %p216
      %p219 = scmp.ne.s32.totalorder %s204, %s218
      %p220 = scmp.eq.s32.totalorder %s26, 0
      %p221 = por %p219, %p220
      %s222 = ssub.s32 %s20, %s27
      %p223 = scmp.eq.s32.totalorder %s222, 0
      %s225 = sadd.s32 %s224, 1
      %s226 = scalar_select %p223, %s224, %s225
      %p229 = pneg %p223
      %p230 = scmp.eq.s32.totalorder %s20, 2
      %p231 = por %p229, %p230
      %p232 = scmp.ne.s32.totalorder %s224, %s227
      %p233 = scmp.eq.s32.totalorder %s20, 0
      %p234 = por %p232, %p233
      %p235 = scmp.ne.s32.totalorder %s224, %s227
      %p236 = scmp.eq.s32.totalorder %s25, 2
      %p237 = por %p235, %p236
      %p238 = scmp.ne.s32.totalorder %s227, %s228
      %p239 = scmp.eq.s32.totalorder %s25, 0
      %p240 = por %p238, %p239
      %p241 = scmp.ne.s32.totalorder %s227, %s228
      %p242 = scmp.eq.s32.totalorder %s26, 2
      %p243 = por %p241, %p242
      %p245 = scmp.ne.s32.totalorder %s228, %s244
      %p246 = scmp.eq.s32.totalorder %s26, 0
      %p247 = por %p245, %p246
      %p248 = scmp.le.s32.totalorder 1, %s20
      %p249 = scmp.lt.s32.totalorder %s20, 4
      %p250 = pnand %p248, %p249
      %p251 = pneg %p250
      // Predicated region
      $region9: #{tpu_custom_call.1} parent=5 // pred_check
        _
      $region10: #{tpu_custom_call.1} parent=5 // pred_check_branch
        %253 = sbr.rel (%p250) target = $region12
      $region11: #{tpu_custom_call.1} parent=5 // pred_region
        %s254 = ssub.s32 %s20, 1
        // Predicated region
        $region13: #{tpu_custom_call.1} parent=11 // pred_check
          %p255 = pneg %p67
        $region14: #{tpu_custom_call.1} parent=11 // pred_check_branch
          %257 = sbr.rel (%p255) target = $region16
        $region15: #{tpu_custom_call.1} parent=11 // pred_region
          _
        $region16: #{tpu_custom_call.1} parent=11 // pred_fallthru
          _
        // Predicated region
        $region17: #{tpu_custom_call.1} parent=11 // pred_check
          %p258 = pneg %p88
        $region18: #{tpu_custom_call.1} parent=11 // pred_check_branch
          %260 = sbr.rel (%p258) target = $region20
        $region19: #{tpu_custom_call.1} parent=11 // pred_region
          _
        $region20: #{tpu_custom_call.1} parent=11 // pred_fallthru
          _
        // Predicated region
        $region21: #{tpu_custom_call.1} parent=11 // pred_check
          %p261 = pneg %p109
        $region22: #{tpu_custom_call.1} parent=11 // pred_check_branch
          %263 = sbr.rel (%p261) target = $region24
        $region23: #{tpu_custom_call.1} parent=11 // pred_region
          _
        $region24: #{tpu_custom_call.1} parent=11 // pred_fallthru
          _
        // Predicated region
        $region25: #{tpu_custom_call.1} parent=11 // pred_check
          %p264 = pneg %p130
        $region26: #{tpu_custom_call.1} parent=11 // pred_check_branch
          %266 = sbr.rel (%p264) target = $region28
        $region27: #{tpu_custom_call.1} parent=11 // pred_region
          _
        $region28: #{tpu_custom_call.1} parent=11 // pred_fallthru
          _
        // Predicated region
        $region29: #{tpu_custom_call.1} parent=11 // pred_check
          %p267 = pneg %p151
        $region30: #{tpu_custom_call.1} parent=11 // pred_check_branch
          %269 = sbr.rel (%p267) target = $region32
        $region31: #{tpu_custom_call.1} parent=11 // pred_region
          _
        $region32: #{tpu_custom_call.1} parent=11 // pred_fallthru
          _
        // Predicated region
        $region33: #{tpu_custom_call.1} parent=11 // pred_check
          %p270 = pneg %p172
        $region34: #{tpu_custom_call.1} parent=11 // pred_check_branch
          %272 = sbr.rel (%p270) target = $region36
        $region35: #{tpu_custom_call.1} parent=11 // pred_region
          _
        $region36: #{tpu_custom_call.1} parent=11 // pred_fallthru
          _
        // Predicated region
        $region37: #{tpu_custom_call.1} parent=11 // pred_check
          %p273 = pneg %p193
        $region38: #{tpu_custom_call.1} parent=11 // pred_check_branch
          %275 = sbr.rel (%p273) target = $region40
        $region39: #{tpu_custom_call.1} parent=11 // pred_region
          _
        $region40: #{tpu_custom_call.1} parent=11 // pred_fallthru
          _
        // Predicated region
        $region41: #{tpu_custom_call.1} parent=11 // pred_check
          %p276 = pneg %p214
        $region42: #{tpu_custom_call.1} parent=11 // pred_check_branch
          %278 = sbr.rel (%p276) target = $region44
        $region43: #{tpu_custom_call.1} parent=11 // pred_region
          _
        $region44: #{tpu_custom_call.1} parent=11 // pred_fallthru
          _
      $region12: #{tpu_custom_call.1} parent=5 // pred_fallthru
        _
      %p279 = scmp.lt.s32.totalorder %s20, 3
      // Predicated region
      $region45: #{tpu_custom_call.1} parent=5 // pred_check
        %p280 = pneg %p279
      $region46: #{tpu_custom_call.1} parent=5 // pred_check_branch
        %282 = sbr.rel (%p280) target = $region48
      $region47: #{tpu_custom_call.1} parent=5 // pred_region
        // Predicated region
        $region49: #{tpu_custom_call.1} parent=47 // pred_check
          %p283 = pneg %p40
        $region50: #{tpu_custom_call.1} parent=47 // pred_check_branch
          %285 = sbr.rel (%p283) target = $region52
        $region51: #{tpu_custom_call.1} parent=47 // pred_region
          %p286 = scmp.lt.s32.totalorder %s20, 2
          %s287 = scalar_select %p286, %s20, 2
          %s288 = smul.addr %s287, 4
          %s289 = scalar_lea.vmem %s0, %s288
        $region52: #{tpu_custom_call.1} parent=47 // pred_fallthru
          _
      $region48: #{tpu_custom_call.1} parent=5 // pred_fallthru
        _
      %p290 = scmp.le.s32.totalorder 1, %s20
      %p291 = scmp.lt.s32.totalorder %s20, 4
      %p292 = pnand %p290, %p291
      %p293 = pneg %p292
      // Predicated region
      $region53: #{tpu_custom_call.1} parent=5 // pred_check
        _
      $region54: #{tpu_custom_call.1} parent=5 // pred_check_branch
        %295 = sbr.rel (%p292) target = $region56
      $region55: #{tpu_custom_call.1} parent=5 // pred_region
        %s296 = ssub.s32 %s20, 1
        %p297 = scmp.lt.s32.totalorder %s25, 2
        %s298 = scalar_select %p297, %s25, 2
        %s299 = smul.addr %s298, 4
        %s300 = scalar_lea.vmem %s0, %s299
        %p301 = pneg %p46
        %p302 = pneg %p43
        %p303 = pneg %p67
        %p304 = pneg %p64
        %p305 = pneg %p88
        %p306 = pneg %p85
        %p307 = pneg %p109
        %p308 = pneg %p106
        %p309 = pneg %p130
        %p310 = pneg %p127
        %p311 = pneg %p151
        %p312 = pneg %p148
        %p313 = pneg %p172
        %p314 = pneg %p169
        %p315 = pneg %p193
        %p316 = pneg %p190
        %p317 = pneg %p214
        %p318 = pneg %p211
        %p319 = pneg %p240
        %p320 = pneg %p237
        %s321 = sand.u32 %s227, 1
        %s322 = scalar_lea.sflag [#allocation5], %s321
        %s323 = sand.u32 %s227, 1
        %s324 = scalar_lea.vmem [#allocation4], %s323
        %p325 = scmp.lt.s32.totalorder %s25, 2
        %s326 = scalar_select %p325, %s25, 2
        %s327 = smul.addr %s326, 4
        %s328 = scalar_lea.vmem %s0, %s327
        %v329 = vld [vmem:[%s328] sm:$0x7]
        %v330 = vld [vmem:[%s1] sm:$0xff]
        %v331 = vld [vmem:[%s1 + $0x8] sm:$0xff]
        %v332 = vld [vmem:[%s1 + $0x10] sm:$0xff]
        %v333 = vld [vmem:[%s1 + $0x18] sm:$0xff]
        %v334 = vld [vmem:[%s1 + $0x20] sm:$0xff]
        %v335 = vld [vmem:[%s1 + $0x28] sm:$0xff]
        %v336 = vld [vmem:[%s1 + $0x30] sm:$0xff]
        %v337 = vld [vmem:[%s1 + $0x38] sm:$0xff]
        %v338 = vld [vmem:[%s1 + $0x40] sm:$0xff]
        %v339 = vld [vmem:[%s1 + $0x48] sm:$0xff]
        %v340 = vld [vmem:[%s1 + $0x50] sm:$0xff]
        %v341 = vld [vmem:[%s1 + $0x58] sm:$0xff]
        %v342 = vld [vmem:[%s2] sm:$0xff]
        %v343 = vld [vmem:[%s2 + $0x8] sm:$0xff]
        %v344 = vld [vmem:[%s2 + $0x10] sm:$0xff]
        %v345 = vld [vmem:[%s2 + $0x18] sm:$0xff]
        %v346 = vld [vmem:[%s2 + $0x20] sm:$0xff]
        %v347 = vld [vmem:[%s2 + $0x28] sm:$0xff]
        %v348 = vld [vmem:[%s2 + $0x30] sm:$0xff]
        %v349 = vld [vmem:[%s2 + $0x38] sm:$0xff]
        %v350 = vld [vmem:[%s2 + $0x40] sm:$0xff]
        %v351 = vld [vmem:[%s2 + $0x48] sm:$0xff]
        %v352 = vld [vmem:[%s2 + $0x50] sm:$0xff]
        %v353 = vld [vmem:[%s2 + $0x58] sm:$0xff]
        %355 = vset.pattern.permute.xlu0 0
        %356 = vperm.xlu0 %355, %v330
        %v357 = vpop.permute.xlu0 %356
        %360 = vset.pattern.permute.xlu0 0
        %361 = vperm.xlu0 %360, %v331
        %v362 = vpop.permute.xlu0 %361
        %365 = vset.pattern.permute.xlu0 0
        %366 = vperm.xlu0 %365, %v332
        %v367 = vpop.permute.xlu0 %366
        %370 = vset.pattern.permute.xlu0 0
        %371 = vperm.xlu0 %370, %v333
        %v372 = vpop.permute.xlu0 %371
        %375 = vset.pattern.permute.xlu0 0
        %376 = vperm.xlu0 %375, %v334
        %v377 = vpop.permute.xlu0 %376
        %380 = vset.pattern.permute.xlu0 0
        %381 = vperm.xlu0 %380, %v335
        %v382 = vpop.permute.xlu0 %381
        %385 = vset.pattern.permute.xlu0 0
        %386 = vperm.xlu0 %385, %v336
        %v387 = vpop.permute.xlu0 %386
        %390 = vset.pattern.permute.xlu0 0
        %391 = vperm.xlu0 %390, %v337
        %v392 = vpop.permute.xlu0 %391
        %395 = vset.pattern.permute.xlu0 0
        %396 = vperm.xlu0 %395, %v338
        %v397 = vpop.permute.xlu0 %396
        %400 = vset.pattern.permute.xlu0 0
        %401 = vperm.xlu0 %400, %v339
        %v402 = vpop.permute.xlu0 %401
        %405 = vset.pattern.permute.xlu0 0
        %406 = vperm.xlu0 %405, %v340
        %v407 = vpop.permute.xlu0 %406
        %410 = vset.pattern.permute.xlu0 0
        %411 = vperm.xlu0 %410, %v341
        %v412 = vpop.permute.xlu0 %411
        %v414 = vlaneseq
        %v415 = vshrl.u32 %v414, 7
        %v416 = vsub.s32 0, %v415
        %v417 = vrot.slane %v329, %v416
        %v418 = vmul.f32 %v357, %v417
        %v419 = vmul.f32 %v362, %v417
        %v420 = vmul.f32 %v367, %v417
        %v421 = vmul.f32 %v372, %v417
        %v422 = vmul.f32 %v377, %v417
        %v423 = vmul.f32 %v382, %v417
        %v424 = vmul.f32 %v387, %v417
        %v425 = vmul.f32 %v392, %v417
        %v426 = vmul.f32 %v397, %v417
        %v427 = vmul.f32 %v402, %v417
        %v428 = vmul.f32 %v407, %v417
        %v429 = vmul.f32 %v412, %v417
        %431 = vset.pattern.permute.xlu0 0
        %432 = vperm.xlu0 %431, %v342
        %v433 = vpop.permute.xlu0 %432
        %436 = vset.pattern.permute.xlu0 0
        %437 = vperm.xlu0 %436, %v343
        %v438 = vpop.permute.xlu0 %437
        %441 = vset.pattern.permute.xlu0 0
        %442 = vperm.xlu0 %441, %v344
        %v443 = vpop.permute.xlu0 %442
        %446 = vset.pattern.permute.xlu0 0
        %447 = vperm.xlu0 %446, %v345
        %v448 = vpop.permute.xlu0 %447
        %451 = vset.pattern.permute.xlu0 0
        %452 = vperm.xlu0 %451, %v346
        %v453 = vpop.permute.xlu0 %452
        %456 = vset.pattern.permute.xlu0 0
        %457 = vperm.xlu0 %456, %v347
        %v458 = vpop.permute.xlu0 %457
        %461 = vset.pattern.permute.xlu0 0
        %462 = vperm.xlu0 %461, %v348
        %v463 = vpop.permute.xlu0 %462
        %466 = vset.pattern.permute.xlu0 0
        %467 = vperm.xlu0 %466, %v349
        %v468 = vpop.permute.xlu0 %467
        %471 = vset.pattern.permute.xlu0 0
        %472 = vperm.xlu0 %471, %v350
        %v473 = vpop.permute.xlu0 %472
        %476 = vset.pattern.permute.xlu0 0
        %477 = vperm.xlu0 %476, %v351
        %v478 = vpop.permute.xlu0 %477
        %481 = vset.pattern.permute.xlu0 0
        %482 = vperm.xlu0 %481, %v352
        %v483 = vpop.permute.xlu0 %482
        %486 = vset.pattern.permute.xlu0 0
        %487 = vperm.xlu0 %486, %v353
        %v488 = vpop.permute.xlu0 %487
        %v490 = vadd.f32 %v433, %v418
        %v491 = vadd.f32 %v438, %v419
        %v492 = vadd.f32 %v443, %v420
        %v493 = vadd.f32 %v448, %v421
        %v494 = vadd.f32 %v453, %v422
        %v495 = vadd.f32 %v458, %v423
        %v496 = vadd.f32 %v463, %v424
        %v497 = vadd.f32 %v468, %v425
        %v498 = vadd.f32 %v473, %v426
        %v499 = vadd.f32 %v478, %v427
        %v500 = vadd.f32 %v483, %v428
        %v501 = vadd.f32 %v488, %v429
        %502 = vset.pattern.permute.xlu0 1
        %503 = vperm.xlu0 %502, %v330
        %v504 = vpop.permute.xlu0 %503
        %506 = vset.pattern.permute.xlu0 1
        %507 = vperm.xlu0 %506, %v331
        %v508 = vpop.permute.xlu0 %507
        %510 = vset.pattern.permute.xlu0 1
        %511 = vperm.xlu0 %510, %v332
        %v512 = vpop.permute.xlu0 %511
        %514 = vset.pattern.permute.xlu0 1
        %515 = vperm.xlu0 %514, %v333
        %v516 = vpop.permute.xlu0 %515
        %518 = vset.pattern.permute.xlu0 1
        %519 = vperm.xlu0 %518, %v334
        %v520 = vpop.permute.xlu0 %519
        %522 = vset.pattern.permute.xlu0 1
        %523 = vperm.xlu0 %522, %v335
        %v524 = vpop.permute.xlu0 %523
        %526 = vset.pattern.permute.xlu0 1
        %527 = vperm.xlu0 %526, %v336
        %v528 = vpop.permute.xlu0 %527
        %530 = vset.pattern.permute.xlu0 1
        %531 = vperm.xlu0 %530, %v337
        %v532 = vpop.permute.xlu0 %531
        %534 = vset.pattern.permute.xlu0 1
        %535 = vperm.xlu0 %534, %v338
        %v536 = vpop.permute.xlu0 %535
        %538 = vset.pattern.permute.xlu0 1
        %539 = vperm.xlu0 %538, %v339
        %v540 = vpop.permute.xlu0 %539
        %542 = vset.pattern.permute.xlu0 1
        %543 = vperm.xlu0 %542, %v340
        %v544 = vpop.permute.xlu0 %543
        %546 = vset.pattern.permute.xlu0 1
        %547 = vperm.xlu0 %546, %v341
        %v548 = vpop.permute.xlu0 %547
        %v550 = vlaneseq
        %v551 = vshrl.u32 %v550, 7
        %v552 = vsub.s32 1, %v551
        %v553 = vrot.slane %v329, %v552
        %v554 = vmul.f32 %v504, %v553
        %v555 = vmul.f32 %v508, %v553
        %v556 = vmul.f32 %v512, %v553
        %v557 = vmul.f32 %v516, %v553
        %v558 = vmul.f32 %v520, %v553
        %v559 = vmul.f32 %v524, %v553
        %v560 = vmul.f32 %v528, %v553
        %v561 = vmul.f32 %v532, %v553
        %v562 = vmul.f32 %v536, %v553
        %v563 = vmul.f32 %v540, %v553
        %v564 = vmul.f32 %v544, %v553
        %v565 = vmul.f32 %v548, %v553
        %v566 = vadd.f32 %v490, %v554
        %v567 = vadd.f32 %v491, %v555
        %v568 = vadd.f32 %v492, %v556
        %v569 = vadd.f32 %v493, %v557
        %v570 = vadd.f32 %v494, %v558
        %v571 = vadd.f32 %v495, %v559
        %v572 = vadd.f32 %v496, %v560
        %v573 = vadd.f32 %v497, %v561
        %v574 = vadd.f32 %v498, %v562
        %v575 = vadd.f32 %v499, %v563
        %v576 = vadd.f32 %v500, %v564
        %v577 = vadd.f32 %v501, %v565
        %578 = vset.pattern.permute.xlu0 2
        %579 = vperm.xlu0 %578, %v330
        %v580 = vpop.permute.xlu0 %579
        %582 = vset.pattern.permute.xlu0 2
        %583 = vperm.xlu0 %582, %v331
        %v584 = vpop.permute.xlu0 %583
        %586 = vset.pattern.permute.xlu0 2
        %587 = vperm.xlu0 %586, %v332
        %v588 = vpop.permute.xlu0 %587
        %590 = vset.pattern.permute.xlu0 2
        %591 = vperm.xlu0 %590, %v333
        %v592 = vpop.permute.xlu0 %591
        %594 = vset.pattern.permute.xlu0 2
        %595 = vperm.xlu0 %594, %v334
        %v596 = vpop.permute.xlu0 %595
        %598 = vset.pattern.permute.xlu0 2
        %599 = vperm.xlu0 %598, %v335
        %v600 = vpop.permute.xlu0 %599
        %602 = vset.pattern.permute.xlu0 2
        %603 = vperm.xlu0 %602, %v336
        %v604 = vpop.permute.xlu0 %603
        %606 = vset.pattern.permute.xlu0 2
        %607 = vperm.xlu0 %606, %v337
        %v608 = vpop.permute.xlu0 %607
        %610 = vset.pattern.permute.xlu0 2
        %611 = vperm.xlu0 %610, %v338
        %v612 = vpop.permute.xlu0 %611
        %614 = vset.pattern.permute.xlu0 2
        %615 = vperm.xlu0 %614, %v339
        %v616 = vpop.permute.xlu0 %615
        %618 = vset.pattern.permute.xlu0 2
        %619 = vperm.xlu0 %618, %v340
        %v620 = vpop.permute.xlu0 %619
        %622 = vset.pattern.permute.xlu0 2
        %623 = vperm.xlu0 %622, %v341
        %v624 = vpop.permute.xlu0 %623
        %v626 = vlaneseq
        %v627 = vshrl.u32 %v626, 7
        %v628 = vsub.s32 2, %v627
        %v629 = vrot.slane %v329, %v628
        %v630 = vmul.f32 %v580, %v629
        %v631 = vmul.f32 %v584, %v629
        %v632 = vmul.f32 %v588, %v629
        %v633 = vmul.f32 %v592, %v629
        %v634 = vmul.f32 %v596, %v629
        %v635 = vmul.f32 %v600, %v629
        %v636 = vmul.f32 %v604, %v629
        %v637 = vmul.f32 %v608, %v629
        %v638 = vmul.f32 %v612, %v629
        %v639 = vmul.f32 %v616, %v629
        %v640 = vmul.f32 %v620, %v629
        %v641 = vmul.f32 %v624, %v629
        %v642 = vadd.f32 %v566, %v630
        %v643 = vadd.f32 %v567, %v631
        %v644 = vadd.f32 %v568, %v632
        %v645 = vadd.f32 %v569, %v633
        %v646 = vadd.f32 %v570, %v634
        %v647 = vadd.f32 %v571, %v635
        %v648 = vadd.f32 %v572, %v636
        %v649 = vadd.f32 %v573, %v637
        %v650 = vadd.f32 %v574, %v638
        %v651 = vadd.f32 %v575, %v639
        %v652 = vadd.f32 %v576, %v640
        %v653 = vadd.f32 %v577, %v641
        %v654 = vtanh.pop %v642
        %v655 = vtanh.pop %v643
        %v656 = vtanh.pop %v644
        %v657 = vtanh.pop %v645
        %v658 = vtanh.pop %v646
        %v659 = vtanh.pop %v647
        %v660 = vtanh.pop %v648
        %v661 = vtanh.pop %v649
        %v662 = vtanh.pop %v650
        %v663 = vtanh.pop %v651
        %v664 = vtanh.pop %v652
        %v665 = vtanh.pop %v653
        %v666 = vld [vmem:[%s3] sm:$0xff]
        %v667 = vld [vmem:[%s3 + $0x8] sm:$0xff]
        %v668 = vld [vmem:[%s3 + $0x10] sm:$0xff]
        %v669 = vld [vmem:[%s3 + $0x18] sm:$0xff]
        %v670 = vld [vmem:[%s3 + $0x20] sm:$0xff]
        %v671 = vld [vmem:[%s3 + $0x28] sm:$0xff]
        %v672 = vld [vmem:[%s3 + $0x30] sm:$0xff]
        %v673 = vld [vmem:[%s3 + $0x38] sm:$0xff]
        %v674 = vld [vmem:[%s3 + $0x40] sm:$0xff]
        %v675 = vld [vmem:[%s3 + $0x48] sm:$0xff]
        %v676 = vld [vmem:[%s3 + $0x50] sm:$0xff]
        %v677 = vld [vmem:[%s3 + $0x58] sm:$0xff]
        %v678 = vld [vmem:[%s4] sm:$0xff]
        %v679 = vld [vmem:[%s4 + $0x8] sm:$0xff]
        %v680 = vld [vmem:[%s4 + $0x10] sm:$0xff]
        %v681 = vld [vmem:[%s4 + $0x18] sm:$0xff]
        %v682 = vld [vmem:[%s4 + $0x20] sm:$0xff]
        %v683 = vld [vmem:[%s4 + $0x28] sm:$0xff]
        %v684 = vld [vmem:[%s4 + $0x30] sm:$0xff]
        %v685 = vld [vmem:[%s4 + $0x38] sm:$0xff]
        %v686 = vld [vmem:[%s4 + $0x40] sm:$0xff]
        %v687 = vld [vmem:[%s4 + $0x48] sm:$0xff]
        %v688 = vld [vmem:[%s4 + $0x50] sm:$0xff]
        %v689 = vld [vmem:[%s4 + $0x58] sm:$0xff]
        %691 = vset.pattern.permute.xlu0 0
        %692 = vperm.xlu0 %691, %v678
        %v693 = vpop.permute.xlu0 %692
        %696 = vset.pattern.permute.xlu0 0
        %697 = vperm.xlu0 %696, %v679
        %v698 = vpop.permute.xlu0 %697
        %701 = vset.pattern.permute.xlu0 0
        %702 = vperm.xlu0 %701, %v680
        %v703 = vpop.permute.xlu0 %702
        %706 = vset.pattern.permute.xlu0 0
        %707 = vperm.xlu0 %706, %v681
        %v708 = vpop.permute.xlu0 %707
        %711 = vset.pattern.permute.xlu0 0
        %712 = vperm.xlu0 %711, %v682
        %v713 = vpop.permute.xlu0 %712
        %716 = vset.pattern.permute.xlu0 0
        %717 = vperm.xlu0 %716, %v683
        %v718 = vpop.permute.xlu0 %717
        %721 = vset.pattern.permute.xlu0 0
        %722 = vperm.xlu0 %721, %v684
        %v723 = vpop.permute.xlu0 %722
        %726 = vset.pattern.permute.xlu0 0
        %727 = vperm.xlu0 %726, %v685
        %v728 = vpop.permute.xlu0 %727
        %731 = vset.pattern.permute.xlu0 0
        %732 = vperm.xlu0 %731, %v686
        %v733 = vpop.permute.xlu0 %732
        %736 = vset.pattern.permute.xlu0 0
        %737 = vperm.xlu0 %736, %v687
        %v738 = vpop.permute.xlu0 %737
        %741 = vset.pattern.permute.xlu0 0
        %742 = vperm.xlu0 %741, %v688
        %v743 = vpop.permute.xlu0 %742
        %746 = vset.pattern.permute.xlu0 0
        %747 = vperm.xlu0 %746, %v689
        %v748 = vpop.permute.xlu0 %747
        %vm750 = vcmask 785408
        %v752 = vsel %vm750, %v666, 0
        %v755 = vsel %vm750, %v667, 0
        %v758 = vsel %vm750, %v668, 0
        %v761 = vsel %vm750, %v669, 0
        %v764 = vsel %vm750, %v670, 0
        %v767 = vsel %vm750, %v671, 0
        %v770 = vsel %vm750, %v672, 0
        %v773 = vsel %vm750, %v673, 0
        %v776 = vsel %vm750, %v674, 0
        %v779 = vsel %vm750, %v675, 0
        %v782 = vsel %vm750, %v676, 0
        %v785 = vsel %vm750, %v677, 0
        %787 = vmatprep.subr.mxu0 0.0
        %v788 = vand.u32 %v654, 4294901760
        %789 = vmatpush1.msra.mxu0 %v788
        %790 = vmatprep.subr.mxu0 0.0
        %v791 = vand.u32 %v655, 4294901760
        %792 = vmatpush1.msra.mxu0 %v791
        %793 = vmatprep.subr.mxu0 0.0
        %v794 = vand.u32 %v656, 4294901760
        %795 = vmatpush1.msra.mxu0 %v794
        %796 = vmatprep.subr.mxu0 0.0
        %v797 = vand.u32 %v657, 4294901760
        %798 = vmatpush1.msra.mxu0 %v797
        %799 = vmatprep.subr.mxu0 0.0
        %v800 = vand.u32 %v658, 4294901760
        %801 = vmatpush1.msra.mxu0 %v800
        %802 = vmatprep.subr.mxu0 0.0
        %v803 = vand.u32 %v659, 4294901760
        %804 = vmatpush1.msra.mxu0 %v803
        %805 = vmatprep.subr.mxu0 0.0
        %v806 = vand.u32 %v660, 4294901760
        %807 = vmatpush1.msra.mxu0 %v806
        %808 = vmatprep.subr.mxu0 0.0
        %v809 = vand.u32 %v661, 4294901760
        %810 = vmatpush1.msra.mxu0 %v809
        %811 = vmatprep.subr.mxu0 0.0
        %v812 = vand.u32 %v662, 4294901760
        %813 = vmatpush1.msra.mxu0 %v812
        %814 = vmatprep.subr.mxu0 0.0
        %v815 = vand.u32 %v663, 4294901760
        %816 = vmatpush1.msra.mxu0 %v815
        %817 = vmatprep.subr.mxu0 0.0
        %v818 = vand.u32 %v664, 4294901760
        %819 = vmatpush1.msra.mxu0 %v818
        %820 = vmatprep.subr.mxu0 0.0
        %v821 = vand.u32 %v665, 4294901760
        %822 = vmatpush1.msra.mxu0 %v821
        %823 = vmatprep.subr.mxu0 0.0
        %824 = vmatpush1.msra.mxu0 0.0
        %825 = vmatprep.subr.mxu0 0.0
        %826 = vmatpush1.msra.mxu0 0.0
        %827 = vmatprep.subr.mxu0 0.0
        %828 = vmatpush1.msra.mxu0 0.0
        %829 = vmatprep.subr.mxu0 0.0
        %830 = vmatpush1.msra.mxu0 0.0
        %831 = vmatprep.subr.mxu0 0.0
        %832 = vmatpush1.msra.mxu0 0.0
        %833 = vmatprep.subr.mxu0 0.0
        %834 = vmatpush1.msra.mxu0 0.0
        %835 = vmatprep.subr.mxu0 0.0
        %836 = vmatpush1.msra.mxu0 0.0
        %837 = vmatprep.subr.mxu0 0.0
        %838 = vmatpush1.msra.mxu0 0.0
        %839 = vmatprep.subr.mxu0 0.0
        %840 = vmatpush1.msra.mxu0 0.0
        %841 = vmatprep.subr.mxu0 0.0
        %842 = vmatpush1.msra.mxu0 0.0
        %843 = vmatprep.subr.mxu0 0.0
        %844 = vmatpush1.msra.mxu0 0.0
        %845 = vmatprep.subr.mxu0 0.0
        %846 = vmatpush1.msra.mxu0 0.0
        %847 = vmatprep.subr.mxu0 0.0
        %848 = vmatpush1.msra.mxu0 0.0
        %849 = vmatprep.subr.mxu0 0.0
        %850 = vmatpush1.msra.mxu0 0.0
        %851 = vmatprep.subr.mxu0 0.0
        %852 = vmatpush1.msra.mxu0 0.0
        %853 = vmatprep.subr.mxu0 0.0
        %854 = vmatpush1.msra.mxu0 0.0
        %855 = vmatprep.subr.mxu0 0.0
        %856 = vmatpush1.msra.mxu0 0.0
        %857 = vmatprep.subr.mxu0 0.0
        %858 = vmatpush1.msra.mxu0 0.0
        %859 = vmatprep.subr.mxu0 0.0
        %860 = vmatpush1.msra.mxu0 0.0
        %861 = vmatprep.subr.mxu0 0.0
        %862 = vmatpush1.msra.mxu0 0.0
        %863 = vmatprep.mubr.f32.mxu0 0.0
        %v864 = vand.u32 %v752, 4294901760
        %v865 = vsub.f32 %v752, %v864
        %v866 = vand.u32 %v865, 4294901760
        %v867 = vsub.f32 %v865, %v866
        %v868 = vand.u32 %v867, 4294901760
        %869 = vmatmul.mubr.f32.gmra.mrb[0].mxu0 %v868
        %v870 = vpop.f32.mrb[0].mxu0
        %v871 = vadd.f32 %v693, %v870
        %v872 = vpop.f32.mrb[0].mxu0
        %873 = vmatprep.mubr.f32.mxu0 0.0
        %v874 = vand.u32 %v755, 4294901760
        %v875 = vsub.f32 %v755, %v874
        %v876 = vand.u32 %v875, 4294901760
        %v877 = vsub.f32 %v875, %v876
        %v878 = vand.u32 %v877, 4294901760
        %879 = vmatmul.mubr.f32.gmra.mrb[0].mxu0 %v878
        %v880 = vpop.f32.mrb[0].mxu0
        %v881 = vadd.f32 %v698, %v880
        %v882 = vpop.f32.mrb[0].mxu0
        %883 = vmatprep.mubr.f32.mxu0 0.0
        %v884 = vand.u32 %v758, 4294901760
        %v885 = vsub.f32 %v758, %v884
        %v886 = vand.u32 %v885, 4294901760
        %v887 = vsub.f32 %v885, %v886
        %v888 = vand.u32 %v887, 4294901760
        %889 = vmatmul.mubr.f32.gmra.mrb[0].mxu0 %v888
        %v890 = vpop.f32.mrb[0].mxu0
        %v891 = vadd.f32 %v703, %v890
        %v892 = vpop.f32.mrb[0].mxu0
        %893 = vmatprep.mubr.f32.mxu0 0.0
        %v894 = vand.u32 %v761, 4294901760
        %v895 = vsub.f32 %v761, %v894
        %v896 = vand.u32 %v895, 4294901760
        %v897 = vsub.f32 %v895, %v896
        %v898 = vand.u32 %v897, 4294901760
        %899 = vmatmul.mubr.f32.gmra.mrb[0].mxu0 %v898
        %v900 = vpop.f32.mrb[0].mxu0
        %v901 = vadd.f32 %v708, %v900
        %v902 = vpop.f32.mrb[0].mxu0
        %903 = vmatprep.mubr.f32.mxu0 0.0
        %v904 = vand.u32 %v764, 4294901760
        %v905 = vsub.f32 %v764, %v904
        %v906 = vand.u32 %v905, 4294901760
        %v907 = vsub.f32 %v905, %v906
        %v908 = vand.u32 %v907, 4294901760
        %909 = vmatmul.mubr.f32.gmra.mrb[0].mxu0 %v908
        %v910 = vpop.f32.mrb[0].mxu0
        %v911 = vadd.f32 %v713, %v910
        %v912 = vpop.f32.mrb[0].mxu0
        %913 = vmatprep.mubr.f32.mxu0 0.0
        %v914 = vand.u32 %v767, 4294901760
        %v915 = vsub.f32 %v767, %v914
        %v916 = vand.u32 %v915, 4294901760
        %v917 = vsub.f32 %v915, %v916
        %v918 = vand.u32 %v917, 4294901760
        %919 = vmatmul.mubr.f32.gmra.mrb[0].mxu0 %v918
        %v920 = vpop.f32.mrb[0].mxu0
        %v921 = vadd.f32 %v718, %v920
        %v922 = vpop.f32.mrb[0].mxu0
        %923 = vmatprep.mubr.f32.mxu0 0.0
        %v924 = vand.u32 %v770, 4294901760
        %v925 = vsub.f32 %v770, %v924
        %v926 = vand.u32 %v925, 4294901760
        %v927 = vsub.f32 %v925, %v926
        %v928 = vand.u32 %v927, 4294901760
        %929 = vmatmul.mubr.f32.gmra.mrb[0].mxu0 %v928
        %v930 = vpop.f32.mrb[0].mxu0
        %v931 = vadd.f32 %v723, %v930
        %v932 = vpop.f32.mrb[0].mxu0
        %933 = vmatprep.mubr.f32.mxu0 0.0
        %v934 = vand.u32 %v773, 4294901760
        %v935 = vsub.f32 %v773, %v934
        %v936 = vand.u32 %v935, 4294901760
        %v937 = vsub.f32 %v935, %v936
        %v938 = vand.u32 %v937, 4294901760
        %939 = vmatmul.mubr.f32.gmra.mrb[0].mxu0 %v938
        %v940 = vpop.f32.mrb[0].mxu0
        %v941 = vadd.f32 %v728, %v940
        %v942 = vpop.f32.mrb[0].mxu0
        %943 = vmatprep.mubr.f32.mxu0 0.0
        %v944 = vand.u32 %v776, 4294901760
        %v945 = vsub.f32 %v776, %v944
        %v946 = vand.u32 %v945, 4294901760
        %v947 = vsub.f32 %v945, %v946
        %v948 = vand.u32 %v947, 4294901760
        %949 = vmatmul.mubr.f32.gmra.mrb[0].mxu0 %v948
        %v950 = vpop.f32.mrb[0].mxu0
        %v951 = vadd.f32 %v733, %v950
        %v952 = vpop.f32.mrb[0].mxu0
        %953 = vmatprep.mubr.f32.mxu0 0.0
        %v954 = vand.u32 %v779, 4294901760
        %v955 = vsub.f32 %v779, %v954
        %v956 = vand.u32 %v955, 4294901760
        %v957 = vsub.f32 %v955, %v956
        %v958 = vand.u32 %v957, 4294901760
        %959 = vmatmul.mubr.f32.gmra.mrb[0].mxu0 %v958
        %v960 = vpop.f32.mrb[0].mxu0
        %v961 = vadd.f32 %v738, %v960
        %v962 = vpop.f32.mrb[0].mxu0
        %963 = vmatprep.mubr.f32.mxu0 0.0
        %v964 = vand.u32 %v782, 4294901760
        %v965 = vsub.f32 %v782, %v964
        %v966 = vand.u32 %v965, 4294901760
        %v967 = vsub.f32 %v965, %v966
        %v968 = vand.u32 %v967, 4294901760
        %969 = vmatmul.mubr.f32.gmra.mrb[0].mxu0 %v968
        %v970 = vpop.f32.mrb[0].mxu0
        %v971 = vadd.f32 %v743, %v970
        %v972 = vpop.f32.mrb[0].mxu0
        %973 = vmatprep.mubr.f32.mxu0 0.0
        %v974 = vand.u32 %v785, 4294901760
        %v975 = vsub.f32 %v785, %v974
        %v976 = vand.u32 %v975, 4294901760
        %v977 = vsub.f32 %v975, %v976
        %v978 = vand.u32 %v977, 4294901760
        %979 = vmatmul.mubr.f32.gmra.mrb[0].mxu0 %v978
        %v980 = vpop.f32.mrb[0].mxu0
        %v981 = vadd.f32 %v748, %v980
        %v982 = vpop.f32.mrb[0].mxu0
        %983 = vdwg.mxu0
        %984 = vmatprep.subr.mxu0 0.0
        %v985 = vand.u32 %v654, 4294901760
        %v986 = vsub.f32 %v654, %v985
        %v987 = vand.u32 %v986, 4294901760
        %v988 = vsub.f32 %v986, %v987
        %v989 = vand.u32 %v988, 4294901760
        %990 = vmatpush1.msra.mxu0 %v989
        %991 = vmatprep.subr.mxu0 0.0
        %v992 = vand.u32 %v655, 4294901760
        %v993 = vsub.f32 %v655, %v992
        %v994 = vand.u32 %v993, 4294901760
        %v995 = vsub.f32 %v993, %v994
        %v996 = vand.u32 %v995, 4294901760
        %997 = vmatpush1.msra.mxu0 %v996
        %998 = vmatprep.subr.mxu0 0.0
        %v999 = vand.u32 %v656, 4294901760
        %v1000 = vsub.f32 %v656, %v999
        %v1001 = vand.u32 %v1000, 4294901760
        %v1002 = vsub.f32 %v1000, %v1001
        %v1003 = vand.u32 %v1002, 4294901760
        %1004 = vmatpush1.msra.mxu0 %v1003
        %1005 = vmatprep.subr.mxu0 0.0
        %v1006 = vand.u32 %v657, 4294901760
        %v1007 = vsub.f32 %v657, %v1006
        %v1008 = vand.u32 %v1007, 4294901760
        %v1009 = vsub.f32 %v1007, %v1008
        %v1010 = vand.u32 %v1009, 4294901760
        %1011 = vmatpush1.msra.mxu0 %v1010
        %1012 = vmatprep.subr.mxu0 0.0
        %v1013 = vand.u32 %v658, 4294901760
        %v1014 = vsub.f32 %v658, %v1013
        %v1015 = vand.u32 %v1014, 4294901760
        %v1016 = vsub.f32 %v1014, %v1015
        %v1017 = vand.u32 %v1016, 4294901760
        %1018 = vmatpush1.msra.mxu0 %v1017
        %1019 = vmatprep.subr.mxu0 0.0
        %v1020 = vand.u32 %v659, 4294901760
        %v1021 = vsub.f32 %v659, %v1020
        %v1022 = vand.u32 %v1021, 4294901760
        %v1023 = vsub.f32 %v1021, %v1022
        %v1024 = vand.u32 %v1023, 4294901760
        %1025 = vmatpush1.msra.mxu0 %v1024
        %1026 = vmatprep.subr.mxu0 0.0
        %v1027 = vand.u32 %v660, 4294901760
        %v1028 = vsub.f32 %v660, %v1027
        %v1029 = vand.u32 %v1028, 4294901760
        %v1030 = vsub.f32 %v1028, %v1029
        %v1031 = vand.u32 %v1030, 4294901760
        %1032 = vmatpush1.msra.mxu0 %v1031
        %1033 = vmatprep.subr.mxu0 0.0
        %v1034 = vand.u32 %v661, 4294901760
        %v1035 = vsub.f32 %v661, %v1034
        %v1036 = vand.u32 %v1035, 4294901760
        %v1037 = vsub.f32 %v1035, %v1036
        %v1038 = vand.u32 %v1037, 4294901760
        %1039 = vmatpush1.msra.mxu0 %v1038
        %1040 = vmatprep.subr.mxu0 0.0
        %v1041 = vand.u32 %v662, 4294901760
        %v1042 = vsub.f32 %v662, %v1041
        %v1043 = vand.u32 %v1042, 4294901760
        %v1044 = vsub.f32 %v1042, %v1043
        %v1045 = vand.u32 %v1044, 4294901760
        %1046 = vmatpush1.msra.mxu0 %v1045
        %1047 = vmatprep.subr.mxu0 0.0
        %v1048 = vand.u32 %v663, 4294901760
        %v1049 = vsub.f32 %v663, %v1048
        %v1050 = vand.u32 %v1049, 4294901760
        %v1051 = vsub.f32 %v1049, %v1050
        %v1052 = vand.u32 %v1051, 4294901760
        %1053 = vmatpush1.msra.mxu0 %v1052
        %1054 = vmatprep.subr.mxu0 0.0
        %v1055 = vand.u32 %v664, 4294901760
        %v1056 = vsub.f32 %v664, %v1055
        %v1057 = vand.u32 %v1056, 4294901760
        %v1058 = vsub.f32 %v1056, %v1057
        %v1059 = vand.u32 %v1058, 4294901760
        %1060 = vmatpush1.msra.mxu0 %v1059
        %1061 = vmatprep.subr.mxu0 0.0
        %v1062 = vand.u32 %v665, 4294901760
        %v1063 = vsub.f32 %v665, %v1062
        %v1064 = vand.u32 %v1063, 4294901760
        %v1065 = vsub.f32 %v1063, %v1064
        %v1066 = vand.u32 %v1065, 4294901760
        %1067 = vmatpush1.msra.mxu0 %v1066
        %1068 = vmatprep.subr.mxu0 0.0
        %1069 = vmatpush1.msra.mxu0 0.0
        %1070 = vmatprep.subr.mxu0 0.0
        %1071 = vmatpush1.msra.mxu0 0.0
        %1072 = vmatprep.subr.mxu0 0.0
        %1073 = vmatpush1.msra.mxu0 0.0
        %1074 = vmatprep.subr.mxu0 0.0
        %1075 = vmatpush1.msra.mxu0 0.0
        %1076 = vmatprep.subr.mxu0 0.0
        %1077 = vmatpush1.msra.mxu0 0.0
        %1078 = vmatprep.subr.mxu0 0.0
        %1079 = vmatpush1.msra.mxu0 0.0
        %1080 = vmatprep.subr.mxu0 0.0
        %1081 = vmatpush1.msra.mxu0 0.0
        %1082 = vmatprep.subr.mxu0 0.0
        %1083 = vmatpush1.msra.mxu0 0.0
        %1084 = vmatprep.subr.mxu0 0.0
        %1085 = vmatpush1.msra.mxu0 0.0
        %1086 = vmatprep.subr.mxu0 0.0
        %1087 = vmatpush1.msra.mxu0 0.0
        %1088 = vmatprep.subr.mxu0 0.0
        %1089 = vmatpush1.msra.mxu0 0.0
        %1090 = vmatprep.subr.mxu0 0.0
        %1091 = vmatpush1.msra.mxu0 0.0
        %1092 = vmatprep.subr.mxu0 0.0
        %1093 = vmatpush1.msra.mxu0 0.0
        %1094 = vmatprep.subr.mxu0 0.0
        %1095 = vmatpush1.msra.mxu0 0.0
        %1096 = vmatprep.subr.mxu0 0.0
        %1097 = vmatpush1.msra.mxu0 0.0
        %1098 = vmatprep.subr.mxu0 0.0
        %1099 = vmatpush1.msra.mxu0 0.0
        %1100 = vmatprep.subr.mxu0 0.0
        %1101 = vmatpush1.msra.mxu0 0.0
        %1102 = vmatprep.subr.mxu0 0.0
        %1103 = vmatpush1.msra.mxu0 0.0
        %1104 = vmatprep.subr.mxu0 0.0
        %1105 = vmatpush1.msra.mxu0 0.0
        %1106 = vmatprep.subr.mxu0 0.0
        %1107 = vmatpush1.msra.mxu0 0.0
        %1108 = vmatprep.mubr.f32.mxu0 0.0
        %v1109 = vand.u32 %v752, 4294901760
        %1110 = vmatmul.mubr.f32.gmra.mrb[0].mxu0 %v1109
        %v1111 = vpop.f32.mrb[0].mxu0
        %v1112 = vadd.f32 %v871, %v1111
        %v1113 = vpop.f32.mrb[0].mxu0
        %1114 = vmatprep.mubr.f32.mxu0 0.0
        %v1115 = vand.u32 %v755, 4294901760
        %1116 = vmatmul.mubr.f32.gmra.mrb[0].mxu0 %v1115
        %v1117 = vpop.f32.mrb[0].mxu0
        %v1118 = vadd.f32 %v881, %v1117
        %v1119 = vpop.f32.mrb[0].mxu0
        %1120 = vmatprep.mubr.f32.mxu0 0.0
        %v1121 = vand.u32 %v758, 4294901760
        %1122 = vmatmul.mubr.f32.gmra.mrb[0].mxu0 %v1121
        %v1123 = vpop.f32.mrb[0].mxu0
        %v1124 = vadd.f32 %v891, %v1123
        %v1125 = vpop.f32.mrb[0].mxu0
        %1126 = vmatprep.mubr.f32.mxu0 0.0
        %v1127 = vand.u32 %v761, 4294901760
        %1128 = vmatmul.mubr.f32.gmra.mrb[0].mxu0 %v1127
        %v1129 = vpop.f32.mrb[0].mxu0
        %v1130 = vadd.f32 %v901, %v1129
        %v1131 = vpop.f32.mrb[0].mxu0
        %1132 = vmatprep.mubr.f32.mxu0 0.0
        %v1133 = vand.u32 %v764, 4294901760
        %1134 = vmatmul.mubr.f32.gmra.mrb[0].mxu0 %v1133
        %v1135 = vpop.f32.mrb[0].mxu0
        %v1136 = vadd.f32 %v911, %v1135
        %v1137 = vpop.f32.mrb[0].mxu0
        %1138 = vmatprep.mubr.f32.mxu0 0.0
        %v1139 = vand.u32 %v767, 4294901760
        %1140 = vmatmul.mubr.f32.gmra.mrb[0].mxu0 %v1139
        %v1141 = vpop.f32.mrb[0].mxu0
        %v1142 = vadd.f32 %v921, %v1141
        %v1143 = vpop.f32.mrb[0].mxu0
        %1144 = vmatprep.mubr.f32.mxu0 0.0
        %v1145 = vand.u32 %v770, 4294901760
        %1146 = vmatmul.mubr.f32.gmra.mrb[0].mxu0 %v1145
        %v1147 = vpop.f32.mrb[0].mxu0
        %v1148 = vadd.f32 %v931, %v1147
        %v1149 = vpop.f32.mrb[0].mxu0
        %1150 = vmatprep.mubr.f32.mxu0 0.0
        %v1151 = vand.u32 %v773, 4294901760
        %1152 = vmatmul.mubr.f32.gmra.mrb[0].mxu0 %v1151
        %v1153 = vpop.f32.mrb[0].mxu0
        %v1154 = vadd.f32 %v941, %v1153
        %v1155 = vpop.f32.mrb[0].mxu0
        %1156 = vmatprep.mubr.f32.mxu0 0.0
        %v1157 = vand.u32 %v776, 4294901760
        %1158 = vmatmul.mubr.f32.gmra.mrb[0].mxu0 %v1157
        %v1159 = vpop.f32.mrb[0].mxu0
        %v1160 = vadd.f32 %v951, %v1159
        %v1161 = vpop.f32.mrb[0].mxu0
        %1162 = vmatprep.mubr.f32.mxu0 0.0
        %v1163 = vand.u32 %v779, 4294901760
        %1164 = vmatmul.mubr.f32.gmra.mrb[0].mxu0 %v1163
        %v1165 = vpop.f32.mrb[0].mxu0
        %v1166 = vadd.f32 %v961, %v1165
        %v1167 = vpop.f32.mrb[0].mxu0
        %1168 = vmatprep.mubr.f32.mxu0 0.0
        %v1169 = vand.u32 %v782, 4294901760
        %1170 = vmatmul.mubr.f32.gmra.mrb[0].mxu0 %v1169
        %v1171 = vpop.f32.mrb[0].mxu0
        %v1172 = vadd.f32 %v971, %v1171
        %v1173 = vpop.f32.mrb[0].mxu0
        %1174 = vmatprep.mubr.f32.mxu0 0.0
        %v1175 = vand.u32 %v785, 4294901760
        %1176 = vmatmul.mubr.f32.gmra.mrb[0].mxu0 %v1175
        %v1177 = vpop.f32.mrb[0].mxu0
        %v1178 = vadd.f32 %v981, %v1177
        %v1179 = vpop.f32.mrb[0].mxu0
        %1180 = vdwg.mxu0
        %1181 = vmatprep.subr.mxu0 0.0
        %v1182 = vand.u32 %v654, 4294901760
        %v1183 = vsub.f32 %v654, %v1182
        %1184 = vmatpush1.msra.mxu0 %v1183
        %1185 = vmatprep.subr.mxu0 0.0
        %v1186 = vand.u32 %v655, 4294901760
        %v1187 = vsub.f32 %v655, %v1186
        %1188 = vmatpush1.msra.mxu0 %v1187
        %1189 = vmatprep.subr.mxu0 0.0
        %v1190 = vand.u32 %v656, 4294901760
        %v1191 = vsub.f32 %v656, %v1190
        %1192 = vmatpush1.msra.mxu0 %v1191
        %1193 = vmatprep.subr.mxu0 0.0
        %v1194 = vand.u32 %v657, 4294901760
        %v1195 = vsub.f32 %v657, %v1194
        %1196 = vmatpush1.msra.mxu0 %v1195
        %1197 = vmatprep.subr.mxu0 0.0
        %v1198 = vand.u32 %v658, 4294901760
        %v1199 = vsub.f32 %v658, %v1198
        %1200 = vmatpush1.msra.mxu0 %v1199
        %1201 = vmatprep.subr.mxu0 0.0
        %v1202 = vand.u32 %v659, 4294901760
        %v1203 = vsub.f32 %v659, %v1202
        %1204 = vmatpush1.msra.mxu0 %v1203
        %1205 = vmatprep.subr.mxu0 0.0
        %v1206 = vand.u32 %v660, 4294901760
        %v1207 = vsub.f32 %v660, %v1206
        %1208 = vmatpush1.msra.mxu0 %v1207
        %1209 = vmatprep.subr.mxu0 0.0
        %v1210 = vand.u32 %v661, 4294901760
        %v1211 = vsub.f32 %v661, %v1210
        %1212 = vmatpush1.msra.mxu0 %v1211
        %1213 = vmatprep.subr.mxu0 0.0
        %v1214 = vand.u32 %v662, 4294901760
        %v1215 = vsub.f32 %v662, %v1214
        %1216 = vmatpush1.msra.mxu0 %v1215
        %1217 = vmatprep.subr.mxu0 0.0
        %v1218 = vand.u32 %v663, 4294901760
        %v1219 = vsub.f32 %v663, %v1218
        %1220 = vmatpush1.msra.mxu0 %v1219
        %1221 = vmatprep.subr.mxu0 0.0
        %v1222 = vand.u32 %v664, 4294901760
        %v1223 = vsub.f32 %v664, %v1222
        %1224 = vmatpush1.msra.mxu0 %v1223
        %1225 = vmatprep.subr.mxu0 0.0
        %v1226 = vand.u32 %v665, 4294901760
        %v1227 = vsub.f32 %v665, %v1226
        %1228 = vmatpush1.msra.mxu0 %v1227
        %1229 = vmatprep.subr.mxu0 0.0
        %1230 = vmatpush1.msra.mxu0 0.0
        %1231 = vmatprep.subr.mxu0 0.0
        %1232 = vmatpush1.msra.mxu0 0.0
        %1233 = vmatprep.subr.mxu0 0.0
        %1234 = vmatpush1.msra.mxu0 0.0
        %1235 = vmatprep.subr.mxu0 0.0
        %1236 = vmatpush1.msra.mxu0 0.0
        %1237 = vmatprep.subr.mxu0 0.0
        %1238 = vmatpush1.msra.mxu0 0.0
        %1239 = vmatprep.subr.mxu0 0.0
        %1240 = vmatpush1.msra.mxu0 0.0
        %1241 = vmatprep.subr.mxu0 0.0
        %1242 = vmatpush1.msra.mxu0 0.0
        %1243 = vmatprep.subr.mxu0 0.0
        %1244 = vmatpush1.msra.mxu0 0.0
        %1245 = vmatprep.subr.mxu0 0.0
        %1246 = vmatpush1.msra.mxu0 0.0
        %1247 = vmatprep.subr.mxu0 0.0
        %1248 = vmatpush1.msra.mxu0 0.0
        %1249 = vmatprep.subr.mxu0 0.0
        %1250 = vmatpush1.msra.mxu0 0.0
        %1251 = vmatprep.subr.mxu0 0.0
        %1252 = vmatpush1.msra.mxu0 0.0
        %1253 = vmatprep.subr.mxu0 0.0
        %1254 = vmatpush1.msra.mxu0 0.0
        %1255 = vmatprep.subr.mxu0 0.0
        %1256 = vmatpush1.msra.mxu0 0.0
        %1257 = vmatprep.subr.mxu0 0.0
        %1258 = vmatpush1.msra.mxu0 0.0
        %1259 = vmatprep.subr.mxu0 0.0
        %1260 = vmatpush1.msra.mxu0 0.0
        %1261 = vmatprep.subr.mxu0 0.0
        %1262 = vmatpush1.msra.mxu0 0.0
        %1263 = vmatprep.subr.mxu0 0.0
        %1264 = vmatpush1.msra.mxu0 0.0
        %1265 = vmatprep.subr.mxu0 0.0
        %1266 = vmatpush1.msra.mxu0 0.0
        %1267 = vmatprep.subr.mxu0 0.0
        %1268 = vmatpush1.msra.mxu0 0.0
        %1269 = vmatprep.mubr.f32.mxu0 0.0
        %v1270 = vand.u32 %v752, 4294901760
        %v1271 = vsub.f32 %v752, %v1270
        %1272 = vmatmul.mubr.f32.gmra.mrb[0].mxu0 %v1271
        %v1273 = vpop.f32.mrb[0].mxu0
        %v1274 = vadd.f32 %v1112, %v1273
        %v1275 = vpop.f32.mrb[0].mxu0
        %1276 = vmatprep.mubr.f32.mxu0 0.0
        %v1277 = vand.u32 %v755, 4294901760
        %v1278 = vsub.f32 %v755, %v1277
        %1279 = vmatmul.mubr.f32.gmra.mrb[0].mxu0 %v1278
        %v1280 = vpop.f32.mrb[0].mxu0
        %v1281 = vadd.f32 %v1118, %v1280
        %v1282 = vpop.f32.mrb[0].mxu0
        %1283 = vmatprep.mubr.f32.mxu0 0.0
        %v1284 = vand.u32 %v758, 4294901760
        %v1285 = vsub.f32 %v758, %v1284
        %1286 = vmatmul.mubr.f32.gmra.mrb[0].mxu0 %v1285
        %v1287 = vpop.f32.mrb[0].mxu0
        %v1288 = vadd.f32 %v1124, %v1287
        %v1289 = vpop.f32.mrb[0].mxu0
        %1290 = vmatprep.mubr.f32.mxu0 0.0
        %v1291 = vand.u32 %v761, 4294901760
        %v1292 = vsub.f32 %v761, %v1291
        %1293 = vmatmul.mubr.f32.gmra.mrb[0].mxu0 %v1292
        %v1294 = vpop.f32.mrb[0].mxu0
        %v1295 = vadd.f32 %v1130, %v1294
        %v1296 = vpop.f32.mrb[0].mxu0
        %1297 = vmatprep.mubr.f32.mxu0 0.0
        %v1298 = vand.u32 %v764, 4294901760
        %v1299 = vsub.f32 %v764, %v1298
        %1300 = vmatmul.mubr.f32.gmra.mrb[0].mxu0 %v1299
        %v1301 = vpop.f32.mrb[0].mxu0
        %v1302 = vadd.f32 %v1136, %v1301
        %v1303 = vpop.f32.mrb[0].mxu0
        %1304 = vmatprep.mubr.f32.mxu0 0.0
        %v1305 = vand.u32 %v767, 4294901760
        %v1306 = vsub.f32 %v767, %v1305
        %1307 = vmatmul.mubr.f32.gmra.mrb[0].mxu0 %v1306
        %v1308 = vpop.f32.mrb[0].mxu0
        %v1309 = vadd.f32 %v1142, %v1308
        %v1310 = vpop.f32.mrb[0].mxu0
        %1311 = vmatprep.mubr.f32.mxu0 0.0
        %v1312 = vand.u32 %v770, 4294901760
        %v1313 = vsub.f32 %v770, %v1312
        %1314 = vmatmul.mubr.f32.gmra.mrb[0].mxu0 %v1313
        %v1315 = vpop.f32.mrb[0].mxu0
        %v1316 = vadd.f32 %v1148, %v1315
        %v1317 = vpop.f32.mrb[0].mxu0
        %1318 = vmatprep.mubr.f32.mxu0 0.0
        %v1319 = vand.u32 %v773, 4294901760
        %v1320 = vsub.f32 %v773, %v1319
        %1321 = vmatmul.mubr.f32.gmra.mrb[0].mxu0 %v1320
        %v1322 = vpop.f32.mrb[0].mxu0
        %v1323 = vadd.f32 %v1154, %v1322
        %v1324 = vpop.f32.mrb[0].mxu0
        %1325 = vmatprep.mubr.f32.mxu0 0.0
        %v1326 = vand.u32 %v776, 4294901760
        %v1327 = vsub.f32 %v776, %v1326
        %1328 = vmatmul.mubr.f32.gmra.mrb[0].mxu0 %v1327
        %v1329 = vpop.f32.mrb[0].mxu0
        %v1330 = vadd.f32 %v1160, %v1329
        %v1331 = vpop.f32.mrb[0].mxu0
        %1332 = vmatprep.mubr.f32.mxu0 0.0
        %v1333 = vand.u32 %v779, 4294901760
        %v1334 = vsub.f32 %v779, %v1333
        %1335 = vmatmul.mubr.f32.gmra.mrb[0].mxu0 %v1334
        %v1336 = vpop.f32.mrb[0].mxu0
        %v1337 = vadd.f32 %v1166, %v1336
        %v1338 = vpop.f32.mrb[0].mxu0
        %1339 = vmatprep.mubr.f32.mxu0 0.0
        %v1340 = vand.u32 %v782, 4294901760
        %v1341 = vsub.f32 %v782, %v1340
        %1342 = vmatmul.mubr.f32.gmra.mrb[0].mxu0 %v1341
        %v1343 = vpop.f32.mrb[0].mxu0
        %v1344 = vadd.f32 %v1172, %v1343
        %v1345 = vpop.f32.mrb[0].mxu0
        %1346 = vmatprep.mubr.f32.mxu0 0.0
        %v1347 = vand.u32 %v785, 4294901760
        %v1348 = vsub.f32 %v785, %v1347
        %1349 = vmatmul.mubr.f32.gmra.mrb[0].mxu0 %v1348
        %v1350 = vpop.f32.mrb[0].mxu0
        %v1351 = vadd.f32 %v1178, %v1350
        %v1352 = vpop.f32.mrb[0].mxu0
        %1353 = vdwg.mxu0
        %1354 = vmatprep.subr.mxu0 0.0
        %v1355 = vand.u32 %v654, 4294901760
        %1356 = vmatpush1.msra.mxu0 %v1355
        %1357 = vmatprep.subr.mxu0 0.0
        %v1358 = vand.u32 %v655, 4294901760
        %1359 = vmatpush1.msra.mxu0 %v1358
        %1360 = vmatprep.subr.mxu0 0.0
        %v1361 = vand.u32 %v656, 4294901760
        %1362 = vmatpush1.msra.mxu0 %v1361
        %1363 = vmatprep.subr.mxu0 0.0
        %v1364 = vand.u32 %v657, 4294901760
        %1365 = vmatpush1.msra.mxu0 %v1364
        %1366 = vmatprep.subr.mxu0 0.0
        %v1367 = vand.u32 %v658, 4294901760
        %1368 = vmatpush1.msra.mxu0 %v1367
        %1369 = vmatprep.subr.mxu0 0.0
        %v1370 = vand.u32 %v659, 4294901760
        %1371 = vmatpush1.msra.mxu0 %v1370
        %1372 = vmatprep.subr.mxu0 0.0
        %v1373 = vand.u32 %v660, 4294901760
        %1374 = vmatpush1.msra.mxu0 %v1373
        %1375 = vmatprep.subr.mxu0 0.0
        %v1376 = vand.u32 %v661, 4294901760
        %1377 = vmatpush1.msra.mxu0 %v1376
        %1378 = vmatprep.subr.mxu0 0.0
        %v1379 = vand.u32 %v662, 4294901760
        %1380 = vmatpush1.msra.mxu0 %v1379
        %1381 = vmatprep.subr.mxu0 0.0
        %v1382 = vand.u32 %v663, 4294901760
        %1383 = vmatpush1.msra.mxu0 %v1382
        %1384 = vmatprep.subr.mxu0 0.0
        %v1385 = vand.u32 %v664, 4294901760
        %1386 = vmatpush1.msra.mxu0 %v1385
        %1387 = vmatprep.subr.mxu0 0.0
        %v1388 = vand.u32 %v665, 4294901760
        %1389 = vmatpush1.msra.mxu0 %v1388
        %1390 = vmatprep.subr.mxu0 0.0
        %1391 = vmatpush1.msra.mxu0 0.0
        %1392 = vmatprep.subr.mxu0 0.0
        %1393 = vmatpush1.msra.mxu0 0.0
        %1394 = vmatprep.subr.mxu0 0.0
        %1395 = vmatpush1.msra.mxu0 0.0
        %1396 = vmatprep.subr.mxu0 0.0
        %1397 = vmatpush1.msra.mxu0 0.0
        %1398 = vmatprep.subr.mxu0 0.0
        %1399 = vmatpush1.msra.mxu0 0.0
        %1400 = vmatprep.subr.mxu0 0.0
        %1401 = vmatpush1.msra.mxu0 0.0
        %1402 = vmatprep.subr.mxu0 0.0
        %1403 = vmatpush1.msra.mxu0 0.0
        %1404 = vmatprep.subr.mxu0 0.0
        %1405 = vmatpush1.msra.mxu0 0.0
        %1406 = vmatprep.subr.mxu0 0.0
        %1407 = vmatpush1.msra.mxu0 0.0
        %1408 = vmatprep.subr.mxu0 0.0
        %1409 = vmatpush1.msra.mxu0 0.0
        %1410 = vmatprep.subr.mxu0 0.0
        %1411 = vmatpush1.msra.mxu0 0.0
        %1412 = vmatprep.subr.mxu0 0.0
        %1413 = vmatpush1.msra.mxu0 0.0
        %1414 = vmatprep.subr.mxu0 0.0
        %1415 = vmatpush1.msra.mxu0 0.0
        %1416 = vmatprep.subr.mxu0 0.0
        %1417 = vmatpush1.msra.mxu0 0.0
        %1418 = vmatprep.subr.mxu0 0.0
        %1419 = vmatpush1.msra.mxu0 0.0
        %1420 = vmatprep.subr.mxu0 0.0
        %1421 = vmatpush1.msra.mxu0 0.0
        %1422 = vmatprep.subr.mxu0 0.0
        %1423 = vmatpush1.msra.mxu0 0.0
        %1424 = vmatprep.subr.mxu0 0.0
        %1425 = vmatpush1.msra.mxu0 0.0
        %1426 = vmatprep.subr.mxu0 0.0
        %1427 = vmatpush1.msra.mxu0 0.0
        %1428 = vmatprep.subr.mxu0 0.0
        %1429 = vmatpush1.msra.mxu0 0.0
        %1430 = vmatprep.mubr.f32.mxu0 0.0
        %v1431 = vand.u32 %v752, 4294901760
        %v1432 = vsub.f32 %v752, %v1431
        %v1433 = vand.u32 %v1432, 4294901760
        %1434 = vmatmul.mubr.f32.gmra.mrb[0].mxu0 %v1433
        %v1435 = vpop.f32.mrb[0].mxu0
        %v1436 = vadd.f32 %v1274, %v1435
        %v1437 = vpop.f32.mrb[0].mxu0
        %1438 = vmatprep.mubr.f32.mxu0 0.0
        %v1439 = vand.u32 %v755, 4294901760
        %v1440 = vsub.f32 %v755, %v1439
        %v1441 = vand.u32 %v1440, 4294901760
        %1442 = vmatmul.mubr.f32.gmra.mrb[0].mxu0 %v1441
        %v1443 = vpop.f32.mrb[0].mxu0
        %v1444 = vadd.f32 %v1281, %v1443
        %v1445 = vpop.f32.mrb[0].mxu0
        %1446 = vmatprep.mubr.f32.mxu0 0.0
        %v1447 = vand.u32 %v758, 4294901760
        %v1448 = vsub.f32 %v758, %v1447
        %v1449 = vand.u32 %v1448, 4294901760
        %1450 = vmatmul.mubr.f32.gmra.mrb[0].mxu0 %v1449
        %v1451 = vpop.f32.mrb[0].mxu0
        %v1452 = vadd.f32 %v1288, %v1451
        %v1453 = vpop.f32.mrb[0].mxu0
        %1454 = vmatprep.mubr.f32.mxu0 0.0
        %v1455 = vand.u32 %v761, 4294901760
        %v1456 = vsub.f32 %v761, %v1455
        %v1457 = vand.u32 %v1456, 4294901760
        %1458 = vmatmul.mubr.f32.gmra.mrb[0].mxu0 %v1457
        %v1459 = vpop.f32.mrb[0].mxu0
        %v1460 = vadd.f32 %v1295, %v1459
        %v1461 = vpop.f32.mrb[0].mxu0
        %1462 = vmatprep.mubr.f32.mxu0 0.0
        %v1463 = vand.u32 %v764, 4294901760
        %v1464 = vsub.f32 %v764, %v1463
        %v1465 = vand.u32 %v1464, 4294901760
        %1466 = vmatmul.mubr.f32.gmra.mrb[0].mxu0 %v1465
        %v1467 = vpop.f32.mrb[0].mxu0
        %v1468 = vadd.f32 %v1302, %v1467
        %v1469 = vpop.f32.mrb[0].mxu0
        %1470 = vmatprep.mubr.f32.mxu0 0.0
        %v1471 = vand.u32 %v767, 4294901760
        %v1472 = vsub.f32 %v767, %v1471
        %v1473 = vand.u32 %v1472, 4294901760
        %1474 = vmatmul.mubr.f32.gmra.mrb[0].mxu0 %v1473
        %v1475 = vpop.f32.mrb[0].mxu0
        %v1476 = vadd.f32 %v1309, %v1475
        %v1477 = vpop.f32.mrb[0].mxu0
        %1478 = vmatprep.mubr.f32.mxu0 0.0
        %v1479 = vand.u32 %v770, 4294901760
        %v1480 = vsub.f32 %v770, %v1479
        %v1481 = vand.u32 %v1480, 4294901760
        %1482 = vmatmul.mubr.f32.gmra.mrb[0].mxu0 %v1481
        %v1483 = vpop.f32.mrb[0].mxu0
        %v1484 = vadd.f32 %v1316, %v1483
        %v1485 = vpop.f32.mrb[0].mxu0
        %1486 = vmatprep.mubr.f32.mxu0 0.0
        %v1487 = vand.u32 %v773, 4294901760
        %v1488 = vsub.f32 %v773, %v1487
        %v1489 = vand.u32 %v1488, 4294901760
        %1490 = vmatmul.mubr.f32.gmra.mrb[0].mxu0 %v1489
        %v1491 = vpop.f32.mrb[0].mxu0
        %v1492 = vadd.f32 %v1323, %v1491
        %v1493 = vpop.f32.mrb[0].mxu0
        %1494 = vmatprep.mubr.f32.mxu0 0.0
        %v1495 = vand.u32 %v776, 4294901760
        %v1496 = vsub.f32 %v776, %v1495
        %v1497 = vand.u32 %v1496, 4294901760
        %1498 = vmatmul.mubr.f32.gmra.mrb[0].mxu0 %v1497
        %v1499 = vpop.f32.mrb[0].mxu0
        %v1500 = vadd.f32 %v1330, %v1499
        %v1501 = vpop.f32.mrb[0].mxu0
        %1502 = vmatprep.mubr.f32.mxu0 0.0
        %v1503 = vand.u32 %v779, 4294901760
        %v1504 = vsub.f32 %v779, %v1503
        %v1505 = vand.u32 %v1504, 4294901760
        %1506 = vmatmul.mubr.f32.gmra.mrb[0].mxu0 %v1505
        %v1507 = vpop.f32.mrb[0].mxu0
        %v1508 = vadd.f32 %v1337, %v1507
        %v1509 = vpop.f32.mrb[0].mxu0
        %1510 = vmatprep.mubr.f32.mxu0 0.0
        %v1511 = vand.u32 %v782, 4294901760
        %v1512 = vsub.f32 %v782, %v1511
        %v1513 = vand.u32 %v1512, 4294901760
        %1514 = vmatmul.mubr.f32.gmra.mrb[0].mxu0 %v1513
        %v1515 = vpop.f32.mrb[0].mxu0
        %v1516 = vadd.f32 %v1344, %v1515
        %v1517 = vpop.f32.mrb[0].mxu0
        %1518 = vmatprep.mubr.f32.mxu0 0.0
        %v1519 = vand.u32 %v785, 4294901760
        %v1520 = vsub.f32 %v785, %v1519
        %v1521 = vand.u32 %v1520, 4294901760
        %1522 = vmatmul.mubr.f32.gmra.mrb[0].mxu0 %v1521
        %v1523 = vpop.f32.mrb[0].mxu0
        %v1524 = vadd.f32 %v1351, %v1523
        %v1525 = vpop.f32.mrb[0].mxu0
        %1526 = vdwg.mxu0
        %1527 = vmatprep.subr.mxu0 0.0
        %v1528 = vand.u32 %v654, 4294901760
        %v1529 = vsub.f32 %v654, %v1528
        %v1530 = vand.u32 %v1529, 4294901760
        %1531 = vmatpush1.msra.mxu0 %v1530
        %1532 = vmatprep.subr.mxu0 0.0
        %v1533 = vand.u32 %v655, 4294901760
        %v1534 = vsub.f32 %v655, %v1533
        %v1535 = vand.u32 %v1534, 4294901760
        %1536 = vmatpush1.msra.mxu0 %v1535
        %1537 = vmatprep.subr.mxu0 0.0
        %v1538 = vand.u32 %v656, 4294901760
        %v1539 = vsub.f32 %v656, %v1538
        %v1540 = vand.u32 %v1539, 4294901760
        %1541 = vmatpush1.msra.mxu0 %v1540
        %1542 = vmatprep.subr.mxu0 0.0
        %v1543 = vand.u32 %v657, 4294901760
        %v1544 = vsub.f32 %v657, %v1543
        %v1545 = vand.u32 %v1544, 4294901760
        %1546 = vmatpush1.msra.mxu0 %v1545
        %1547 = vmatprep.subr.mxu0 0.0
        %v1548 = vand.u32 %v658, 4294901760
        %v1549 = vsub.f32 %v658, %v1548
        %v1550 = vand.u32 %v1549, 4294901760
        %1551 = vmatpush1.msra.mxu0 %v1550
        %1552 = vmatprep.subr.mxu0 0.0
        %v1553 = vand.u32 %v659, 4294901760
        %v1554 = vsub.f32 %v659, %v1553
        %v1555 = vand.u32 %v1554, 4294901760
        %1556 = vmatpush1.msra.mxu0 %v1555
        %1557 = vmatprep.subr.mxu0 0.0
        %v1558 = vand.u32 %v660, 4294901760
        %v1559 = vsub.f32 %v660, %v1558
        %v1560 = vand.u32 %v1559, 4294901760
        %1561 = vmatpush1.msra.mxu0 %v1560
        %1562 = vmatprep.subr.mxu0 0.0
        %v1563 = vand.u32 %v661, 4294901760
        %v1564 = vsub.f32 %v661, %v1563
        %v1565 = vand.u32 %v1564, 4294901760
        %1566 = vmatpush1.msra.mxu0 %v1565
        %1567 = vmatprep.subr.mxu0 0.0
        %v1568 = vand.u32 %v662, 4294901760
        %v1569 = vsub.f32 %v662, %v1568
        %v1570 = vand.u32 %v1569, 4294901760
        %1571 = vmatpush1.msra.mxu0 %v1570
        %1572 = vmatprep.subr.mxu0 0.0
        %v1573 = vand.u32 %v663, 4294901760
        %v1574 = vsub.f32 %v663, %v1573
        %v1575 = vand.u32 %v1574, 4294901760
        %1576 = vmatpush1.msra.mxu0 %v1575
        %1577 = vmatprep.subr.mxu0 0.0
        %v1578 = vand.u32 %v664, 4294901760
        %v1579 = vsub.f32 %v664, %v1578
        %v1580 = vand.u32 %v1579, 4294901760
        %1581 = vmatpush1.msra.mxu0 %v1580
        %1582 = vmatprep.subr.mxu0 0.0
        %v1583 = vand.u32 %v665, 4294901760
        %v1584 = vsub.f32 %v665, %v1583
        %v1585 = vand.u32 %v1584, 4294901760
        %1586 = vmatpush1.msra.mxu0 %v1585
        %1587 = vmatprep.subr.mxu0 0.0
        %1588 = vmatpush1.msra.mxu0 0.0
        %1589 = vmatprep.subr.mxu0 0.0
        %1590 = vmatpush1.msra.mxu0 0.0
        %1591 = vmatprep.subr.mxu0 0.0
        %1592 = vmatpush1.msra.mxu0 0.0
        %1593 = vmatprep.subr.mxu0 0.0
        %1594 = vmatpush1.msra.mxu0 0.0
        %1595 = vmatprep.subr.mxu0 0.0
        %1596 = vmatpush1.msra.mxu0 0.0
        %1597 = vmatprep.subr.mxu0 0.0
        %1598 = vmatpush1.msra.mxu0 0.0
        %1599 = vmatprep.subr.mxu0 0.0
        %1600 = vmatpush1.msra.mxu0 0.0
        %1601 = vmatprep.subr.mxu0 0.0
        %1602 = vmatpush1.msra.mxu0 0.0
        %1603 = vmatprep.subr.mxu0 0.0
        %1604 = vmatpush1.msra.mxu0 0.0
        %1605 = vmatprep.subr.mxu0 0.0
        %1606 = vmatpush1.msra.mxu0 0.0
        %1607 = vmatprep.subr.mxu0 0.0
        %1608 = vmatpush1.msra.mxu0 0.0
        %1609 = vmatprep.subr.mxu0 0.0
        %1610 = vmatpush1.msra.mxu0 0.0
        %1611 = vmatprep.subr.mxu0 0.0
        %1612 = vmatpush1.msra.mxu0 0.0
        %1613 = vmatprep.subr.mxu0 0.0
        %1614 = vmatpush1.msra.mxu0 0.0
        %1615 = vmatprep.subr.mxu0 0.0
        %1616 = vmatpush1.msra.mxu0 0.0
        %1617 = vmatprep.subr.mxu0 0.0
        %1618 = vmatpush1.msra.mxu0 0.0
        %1619 = vmatprep.subr.mxu0 0.0
        %1620 = vmatpush1.msra.mxu0 0.0
        %1621 = vmatprep.subr.mxu0 0.0
        %1622 = vmatpush1.msra.mxu0 0.0
        %1623 = vmatprep.subr.mxu0 0.0
        %1624 = vmatpush1.msra.mxu0 0.0
        %1625 = vmatprep.subr.mxu0 0.0
        %1626 = vmatpush1.msra.mxu0 0.0
        %1627 = vmatprep.mubr.f32.mxu0 0.0
        %v1628 = vand.u32 %v752, 4294901760
        %1629 = vmatmul.mubr.f32.gmra.mrb[0].mxu0 %v1628
        %v1630 = vpop.f32.mrb[0].mxu0
        %v1631 = vadd.f32 %v1436, %v1630
        %v1632 = vpop.f32.mrb[0].mxu0
        %1633 = vmatprep.mubr.f32.mxu0 0.0
        %v1634 = vand.u32 %v755, 4294901760
        %1635 = vmatmul.mubr.f32.gmra.mrb[0].mxu0 %v1634
        %v1636 = vpop.f32.mrb[0].mxu0
        %v1637 = vadd.f32 %v1444, %v1636
        %v1638 = vpop.f32.mrb[0].mxu0
        %1639 = vmatprep.mubr.f32.mxu0 0.0
        %v1640 = vand.u32 %v758, 4294901760
        %1641 = vmatmul.mubr.f32.gmra.mrb[0].mxu0 %v1640
        %v1642 = vpop.f32.mrb[0].mxu0
        %v1643 = vadd.f32 %v1452, %v1642
        %v1644 = vpop.f32.mrb[0].mxu0
        %1645 = vmatprep.mubr.f32.mxu0 0.0
        %v1646 = vand.u32 %v761, 4294901760
        %1647 = vmatmul.mubr.f32.gmra.mrb[0].mxu0 %v1646
        %v1648 = vpop.f32.mrb[0].mxu0
        %v1649 = vadd.f32 %v1460, %v1648
        %v1650 = vpop.f32.mrb[0].mxu0
        %1651 = vmatprep.mubr.f32.mxu0 0.0
        %v1652 = vand.u32 %v764, 4294901760
        %1653 = vmatmul.mubr.f32.gmra.mrb[0].mxu0 %v1652
        %v1654 = vpop.f32.mrb[0].mxu0
        %v1655 = vadd.f32 %v1468, %v1654
        %v1656 = vpop.f32.mrb[0].mxu0
        %1657 = vmatprep.mubr.f32.mxu0 0.0
        %v1658 = vand.u32 %v767, 4294901760
        %1659 = vmatmul.mubr.f32.gmra.mrb[0].mxu0 %v1658
        %v1660 = vpop.f32.mrb[0].mxu0
        %v1661 = vadd.f32 %v1476, %v1660
        %v1662 = vpop.f32.mrb[0].mxu0
        %1663 = vmatprep.mubr.f32.mxu0 0.0
        %v1664 = vand.u32 %v770, 4294901760
        %1665 = vmatmul.mubr.f32.gmra.mrb[0].mxu0 %v1664
        %v1666 = vpop.f32.mrb[0].mxu0
        %v1667 = vadd.f32 %v1484, %v1666
        %v1668 = vpop.f32.mrb[0].mxu0
        %1669 = vmatprep.mubr.f32.mxu0 0.0
        %v1670 = vand.u32 %v773, 4294901760
        %1671 = vmatmul.mubr.f32.gmra.mrb[0].mxu0 %v1670
        %v1672 = vpop.f32.mrb[0].mxu0
        %v1673 = vadd.f32 %v1492, %v1672
        %v1674 = vpop.f32.mrb[0].mxu0
        %1675 = vmatprep.mubr.f32.mxu0 0.0
        %v1676 = vand.u32 %v776, 4294901760
        %1677 = vmatmul.mubr.f32.gmra.mrb[0].mxu0 %v1676
        %v1678 = vpop.f32.mrb[0].mxu0
        %v1679 = vadd.f32 %v1500, %v1678
        %v1680 = vpop.f32.mrb[0].mxu0
        %1681 = vmatprep.mubr.f32.mxu0 0.0
        %v1682 = vand.u32 %v779, 4294901760
        %1683 = vmatmul.mubr.f32.gmra.mrb[0].mxu0 %v1682
        %v1684 = vpop.f32.mrb[0].mxu0
        %v1685 = vadd.f32 %v1508, %v1684
        %v1686 = vpop.f32.mrb[0].mxu0
        %1687 = vmatprep.mubr.f32.mxu0 0.0
        %v1688 = vand.u32 %v782, 4294901760
        %1689 = vmatmul.mubr.f32.gmra.mrb[0].mxu0 %v1688
        %v1690 = vpop.f32.mrb[0].mxu0
        %v1691 = vadd.f32 %v1516, %v1690
        %v1692 = vpop.f32.mrb[0].mxu0
        %1693 = vmatprep.mubr.f32.mxu0 0.0
        %v1694 = vand.u32 %v785, 4294901760
        %1695 = vmatmul.mubr.f32.gmra.mrb[0].mxu0 %v1694
        %v1696 = vpop.f32.mrb[0].mxu0
        %v1697 = vadd.f32 %v1524, %v1696
        %v1698 = vpop.f32.mrb[0].mxu0
        %1699 = vdwg.mxu0
        %1700 = vmatprep.subr.mxu0 0.0
        %v1701 = vand.u32 %v654, 4294901760
        %1702 = vmatpush1.msra.mxu0 %v1701
        %1703 = vmatprep.subr.mxu0 0.0
        %v1704 = vand.u32 %v655, 4294901760
        %1705 = vmatpush1.msra.mxu0 %v1704
        %1706 = vmatprep.subr.mxu0 0.0
        %v1707 = vand.u32 %v656, 4294901760
        %1708 = vmatpush1.msra.mxu0 %v1707
        %1709 = vmatprep.subr.mxu0 0.0
        %v1710 = vand.u32 %v657, 4294901760
        %1711 = vmatpush1.msra.mxu0 %v1710
        %1712 = vmatprep.subr.mxu0 0.0
        %v1713 = vand.u32 %v658, 4294901760
        %1714 = vmatpush1.msra.mxu0 %v1713
        %1715 = vmatprep.subr.mxu0 0.0
        %v1716 = vand.u32 %v659, 4294901760
        %1717 = vmatpush1.msra.mxu0 %v1716
        %1718 = vmatprep.subr.mxu0 0.0
        %v1719 = vand.u32 %v660, 4294901760
        %1720 = vmatpush1.msra.mxu0 %v1719
        %1721 = vmatprep.subr.mxu0 0.0
        %v1722 = vand.u32 %v661, 4294901760
        %1723 = vmatpush1.msra.mxu0 %v1722
        %1724 = vmatprep.subr.mxu0 0.0
        %v1725 = vand.u32 %v662, 4294901760
        %1726 = vmatpush1.msra.mxu0 %v1725
        %1727 = vmatprep.subr.mxu0 0.0
        %v1728 = vand.u32 %v663, 4294901760
        %1729 = vmatpush1.msra.mxu0 %v1728
        %1730 = vmatprep.subr.mxu0 0.0
        %v1731 = vand.u32 %v664, 4294901760
        %1732 = vmatpush1.msra.mxu0 %v1731
        %1733 = vmatprep.subr.mxu0 0.0
        %v1734 = vand.u32 %v665, 4294901760
        %1735 = vmatpush1.msra.mxu0 %v1734
        %1736 = vmatprep.subr.mxu0 0.0
        %1737 = vmatpush1.msra.mxu0 0.0
        %1738 = vmatprep.subr.mxu0 0.0
        %1739 = vmatpush1.msra.mxu0 0.0
        %1740 = vmatprep.subr.mxu0 0.0
        %1741 = vmatpush1.msra.mxu0 0.0
        %1742 = vmatprep.subr.mxu0 0.0
        %1743 = vmatpush1.msra.mxu0 0.0
        %1744 = vmatprep.subr.mxu0 0.0
        %1745 = vmatpush1.msra.mxu0 0.0
        %1746 = vmatprep.subr.mxu0 0.0
        %1747 = vmatpush1.msra.mxu0 0.0
        %1748 = vmatprep.subr.mxu0 0.0
        %1749 = vmatpush1.msra.mxu0 0.0
        %1750 = vmatprep.subr.mxu0 0.0
        %1751 = vmatpush1.msra.mxu0 0.0
        %1752 = vmatprep.subr.mxu0 0.0
        %1753 = vmatpush1.msra.mxu0 0.0
        %1754 = vmatprep.subr.mxu0 0.0
        %1755 = vmatpush1.msra.mxu0 0.0
        %1756 = vmatprep.subr.mxu0 0.0
        %1757 = vmatpush1.msra.mxu0 0.0
        %1758 = vmatprep.subr.mxu0 0.0
        %1759 = vmatpush1.msra.mxu0 0.0
        %1760 = vmatprep.subr.mxu0 0.0
        %1761 = vmatpush1.msra.mxu0 0.0
        %1762 = vmatprep.subr.mxu0 0.0
        %1763 = vmatpush1.msra.mxu0 0.0
        %1764 = vmatprep.subr.mxu0 0.0
        %1765 = vmatpush1.msra.mxu0 0.0
        %1766 = vmatprep.subr.mxu0 0.0
        %1767 = vmatpush1.msra.mxu0 0.0
        %1768 = vmatprep.subr.mxu0 0.0
        %1769 = vmatpush1.msra.mxu0 0.0
        %1770 = vmatprep.subr.mxu0 0.0
        %1771 = vmatpush1.msra.mxu0 0.0
        %1772 = vmatprep.subr.mxu0 0.0
        %1773 = vmatpush1.msra.mxu0 0.0
        %1774 = vmatprep.subr.mxu0 0.0
        %1775 = vmatpush1.msra.mxu0 0.0
        %1776 = vmatprep.mubr.f32.mxu0 0.0
        %v1777 = vand.u32 %v752, 4294901760
        %1778 = vmatmul.mubr.f32.gmra.mrb[0].mxu0 %v1777
        %v1779 = vpop.f32.mrb[0].mxu0
        %v1780 = vadd.f32 %v1631, %v1779
        %v1781 = vpop.f32.mrb[0].mxu0
        %1782 = vmatprep.mubr.f32.mxu0 0.0
        %v1783 = vand.u32 %v755, 4294901760
        %1784 = vmatmul.mubr.f32.gmra.mrb[0].mxu0 %v1783
        %v1785 = vpop.f32.mrb[0].mxu0
        %v1786 = vadd.f32 %v1637, %v1785
        %v1787 = vpop.f32.mrb[0].mxu0
        %1788 = vmatprep.mubr.f32.mxu0 0.0
        %v1789 = vand.u32 %v758, 4294901760
        %1790 = vmatmul.mubr.f32.gmra.mrb[0].mxu0 %v1789
        %v1791 = vpop.f32.mrb[0].mxu0
        %v1792 = vadd.f32 %v1643, %v1791
        %v1793 = vpop.f32.mrb[0].mxu0
        %1794 = vmatprep.mubr.f32.mxu0 0.0
        %v1795 = vand.u32 %v761, 4294901760
        %1796 = vmatmul.mubr.f32.gmra.mrb[0].mxu0 %v1795
        %v1797 = vpop.f32.mrb[0].mxu0
        %v1798 = vadd.f32 %v1649, %v1797
        %v1799 = vpop.f32.mrb[0].mxu0
        %1800 = vmatprep.mubr.f32.mxu0 0.0
        %v1801 = vand.u32 %v764, 4294901760
        %1802 = vmatmul.mubr.f32.gmra.mrb[0].mxu0 %v1801
        %v1803 = vpop.f32.mrb[0].mxu0
        %v1804 = vadd.f32 %v1655, %v1803
        %v1805 = vpop.f32.mrb[0].mxu0
        %1806 = vmatprep.mubr.f32.mxu0 0.0
        %v1807 = vand.u32 %v767, 4294901760
        %1808 = vmatmul.mubr.f32.gmra.mrb[0].mxu0 %v1807
        %v1809 = vpop.f32.mrb[0].mxu0
        %v1810 = vadd.f32 %v1661, %v1809
        %v1811 = vpop.f32.mrb[0].mxu0
        %1812 = vmatprep.mubr.f32.mxu0 0.0
        %v1813 = vand.u32 %v770, 4294901760
        %1814 = vmatmul.mubr.f32.gmra.mrb[0].mxu0 %v1813
        %v1815 = vpop.f32.mrb[0].mxu0
        %v1816 = vadd.f32 %v1667, %v1815
        %v1817 = vpop.f32.mrb[0].mxu0
        %1818 = vmatprep.mubr.f32.mxu0 0.0
        %v1819 = vand.u32 %v773, 4294901760
        %1820 = vmatmul.mubr.f32.gmra.mrb[0].mxu0 %v1819
        %v1821 = vpop.f32.mrb[0].mxu0
        %v1822 = vadd.f32 %v1673, %v1821
        %v1823 = vpop.f32.mrb[0].mxu0
        %1824 = vmatprep.mubr.f32.mxu0 0.0
        %v1825 = vand.u32 %v776, 4294901760
        %1826 = vmatmul.mubr.f32.gmra.mrb[0].mxu0 %v1825
        %v1827 = vpop.f32.mrb[0].mxu0
        %v1828 = vadd.f32 %v1679, %v1827
        %v1829 = vpop.f32.mrb[0].mxu0
        %1830 = vmatprep.mubr.f32.mxu0 0.0
        %v1831 = vand.u32 %v779, 4294901760
        %1832 = vmatmul.mubr.f32.gmra.mrb[0].mxu0 %v1831
        %v1833 = vpop.f32.mrb[0].mxu0
        %v1834 = vadd.f32 %v1685, %v1833
        %v1835 = vpop.f32.mrb[0].mxu0
        %1836 = vmatprep.mubr.f32.mxu0 0.0
        %v1837 = vand.u32 %v782, 4294901760
        %1838 = vmatmul.mubr.f32.gmra.mrb[0].mxu0 %v1837
        %v1839 = vpop.f32.mrb[0].mxu0
        %v1840 = vadd.f32 %v1691, %v1839
        %v1841 = vpop.f32.mrb[0].mxu0
        %1842 = vmatprep.mubr.f32.mxu0 0.0
        %v1843 = vand.u32 %v785, 4294901760
        %1844 = vmatmul.mubr.f32.gmra.mrb[0].mxu0 %v1843
        %v1845 = vpop.f32.mrb[0].mxu0
        %v1846 = vadd.f32 %v1697, %v1845
        %v1847 = vpop.f32.mrb[0].mxu0
        %1848 = vdwg.mxu0
        %v1849 = vtanh.pop %v1780
        %v1850 = vtanh.pop %v1786
        %v1851 = vtanh.pop %v1792
        %v1852 = vtanh.pop %v1798
        %v1853 = vtanh.pop %v1804
        %v1854 = vtanh.pop %v1810
        %v1855 = vtanh.pop %v1816
        %v1856 = vtanh.pop %v1822
        %v1857 = vtanh.pop %v1828
        %v1858 = vtanh.pop %v1834
        %v1859 = vtanh.pop %v1840
        %v1860 = vtanh.pop %v1846
        %v1861 = vld [vmem:[%s5] sm:$0xff]
        %v1862 = vld [vmem:[%s5 + $0x8] sm:$0xff]
        %v1863 = vld [vmem:[%s5 + $0x10] sm:$0xff]
        %v1864 = vld [vmem:[%s5 + $0x18] sm:$0xff]
        %v1865 = vld [vmem:[%s5 + $0x20] sm:$0xff]
        %v1866 = vld [vmem:[%s5 + $0x28] sm:$0xff]
        %v1867 = vld [vmem:[%s6] sm:$0xff]
        %v1868 = vld [vmem:[%s6 + $0x8] sm:$0xff]
        %v1869 = vld [vmem:[%s6 + $0x10] sm:$0xff]
        %v1870 = vld [vmem:[%s6 + $0x18] sm:$0xff]
        %v1871 = vld [vmem:[%s6 + $0x20] sm:$0xff]
        %v1872 = vld [vmem:[%s6 + $0x28] sm:$0xff]
        %1874 = vset.pattern.permute.xlu0 0
        %1875 = vperm.xlu0 %1874, %v1867
        %v1876 = vpop.permute.xlu0 %1875
        %1879 = vset.pattern.permute.xlu0 0
        %1880 = vperm.xlu0 %1879, %v1868
        %v1881 = vpop.permute.xlu0 %1880
        %1884 = vset.pattern.permute.xlu0 0
        %1885 = vperm.xlu0 %1884, %v1869
        %v1886 = vpop.permute.xlu0 %1885
        %1889 = vset.pattern.permute.xlu0 0
        %1890 = vperm.xlu0 %1889, %v1870
        %v1891 = vpop.permute.xlu0 %1890
        %1894 = vset.pattern.permute.xlu0 0
        %1895 = vperm.xlu0 %1894, %v1871
        %v1896 = vpop.permute.xlu0 %1895
        %1899 = vset.pattern.permute.xlu0 0
        %1900 = vperm.xlu0 %1899, %v1872
        %v1901 = vpop.permute.xlu0 %1900
        %v1904 = vsel %vm750, %v1861, 0
        %v1907 = vsel %vm750, %v1862, 0
        %v1910 = vsel %vm750, %v1863, 0
        %v1913 = vsel %vm750, %v1864, 0
        %v1916 = vsel %vm750, %v1865, 0
        %v1919 = vsel %vm750, %v1866, 0
        %1921 = vmatprep.subr.mxu0 0.0
        %v1922 = vand.u32 %v1849, 4294901760
        %1923 = vmatpush1.msra.mxu0 %v1922
        %1924 = vmatprep.subr.mxu0 0.0
        %v1925 = vand.u32 %v1850, 4294901760
        %1926 = vmatpush1.msra.mxu0 %v1925
        %1927 = vmatprep.subr.mxu0 0.0
        %v1928 = vand.u32 %v1851, 4294901760
        %1929 = vmatpush1.msra.mxu0 %v1928
        %1930 = vmatprep.subr.mxu0 0.0
        %v1931 = vand.u32 %v1852, 4294901760
        %1932 = vmatpush1.msra.mxu0 %v1931
        %1933 = vmatprep.subr.mxu0 0.0
        %v1934 = vand.u32 %v1853, 4294901760
        %1935 = vmatpush1.msra.mxu0 %v1934
        %1936 = vmatprep.subr.mxu0 0.0
        %v1937 = vand.u32 %v1854, 4294901760
        %1938 = vmatpush1.msra.mxu0 %v1937
        %1939 = vmatprep.subr.mxu0 0.0
        %v1940 = vand.u32 %v1855, 4294901760
        %1941 = vmatpush1.msra.mxu0 %v1940
        %1942 = vmatprep.subr.mxu0 0.0
        %v1943 = vand.u32 %v1856, 4294901760
        %1944 = vmatpush1.msra.mxu0 %v1943
        %1945 = vmatprep.subr.mxu0 0.0
        %v1946 = vand.u32 %v1857, 4294901760
        %1947 = vmatpush1.msra.mxu0 %v1946
        %1948 = vmatprep.subr.mxu0 0.0
        %v1949 = vand.u32 %v1858, 4294901760
        %1950 = vmatpush1.msra.mxu0 %v1949
        %1951 = vmatprep.subr.mxu0 0.0
        %v1952 = vand.u32 %v1859, 4294901760
        %1953 = vmatpush1.msra.mxu0 %v1952
        %1954 = vmatprep.subr.mxu0 0.0
        %v1955 = vand.u32 %v1860, 4294901760
        %1956 = vmatpush1.msra.mxu0 %v1955
        %1957 = vmatprep.subr.mxu0 0.0
        %1958 = vmatpush1.msra.mxu0 0.0
        %1959 = vmatprep.subr.mxu0 0.0
        %1960 = vmatpush1.msra.mxu0 0.0
        %1961 = vmatprep.subr.mxu0 0.0
        %1962 = vmatpush1.msra.mxu0 0.0
        %1963 = vmatprep.subr.mxu0 0.0
        %1964 = vmatpush1.msra.mxu0 0.0
        %1965 = vmatprep.subr.mxu0 0.0
        %1966 = vmatpush1.msra.mxu0 0.0
        %1967 = vmatprep.subr.mxu0 0.0
        %1968 = vmatpush1.msra.mxu0 0.0
        %1969 = vmatprep.subr.mxu0 0.0
        %1970 = vmatpush1.msra.mxu0 0.0
        %1971 = vmatprep.subr.mxu0 0.0
        %1972 = vmatpush1.msra.mxu0 0.0
        %1973 = vmatprep.subr.mxu0 0.0
        %1974 = vmatpush1.msra.mxu0 0.0
        %1975 = vmatprep.subr.mxu0 0.0
        %1976 = vmatpush1.msra.mxu0 0.0
        %1977 = vmatprep.subr.mxu0 0.0
        %1978 = vmatpush1.msra.mxu0 0.0
        %1979 = vmatprep.subr.mxu0 0.0
        %1980 = vmatpush1.msra.mxu0 0.0
        %1981 = vmatprep.subr.mxu0 0.0
        %1982 = vmatpush1.msra.mxu0 0.0
        %1983 = vmatprep.subr.mxu0 0.0
        %1984 = vmatpush1.msra.mxu0 0.0
        %1985 = vmatprep.subr.mxu0 0.0
        %1986 = vmatpush1.msra.mxu0 0.0
        %1987 = vmatprep.subr.mxu0 0.0
        %1988 = vmatpush1.msra.mxu0 0.0
        %1989 = vmatprep.subr.mxu0 0.0
        %1990 = vmatpush1.msra.mxu0 0.0
        %1991 = vmatprep.subr.mxu0 0.0
        %1992 = vmatpush1.msra.mxu0 0.0
        %1993 = vmatprep.subr.mxu0 0.0
        %1994 = vmatpush1.msra.mxu0 0.0
        %1995 = vmatprep.subr.mxu0 0.0
        %1996 = vmatpush1.msra.mxu0 0.0
        %1997 = vmatprep.mubr.f32.mxu0 0.0
        %v1998 = vand.u32 %v1904, 4294901760
        %v1999 = vsub.f32 %v1904, %v1998
        %v2000 = vand.u32 %v1999, 4294901760
        %v2001 = vsub.f32 %v1999, %v2000
        %v2002 = vand.u32 %v2001, 4294901760
        %2003 = vmatmul.mubr.f32.gmra.mrb[0].mxu0 %v2002
        %v2004 = vpop.f32.mrb[0].mxu0
        %v2005 = vadd.f32 %v1876, %v2004
        %v2006 = vpop.f32.mrb[0].mxu0
        %2007 = vmatprep.mubr.f32.mxu0 0.0
        %v2008 = vand.u32 %v1907, 4294901760
        %v2009 = vsub.f32 %v1907, %v2008
        %v2010 = vand.u32 %v2009, 4294901760
        %v2011 = vsub.f32 %v2009, %v2010
        %v2012 = vand.u32 %v2011, 4294901760
        %2013 = vmatmul.mubr.f32.gmra.mrb[0].mxu0 %v2012
        %v2014 = vpop.f32.mrb[0].mxu0
        %v2015 = vadd.f32 %v1881, %v2014
        %v2016 = vpop.f32.mrb[0].mxu0
        %2017 = vmatprep.mubr.f32.mxu0 0.0
        %v2018 = vand.u32 %v1910, 4294901760
        %v2019 = vsub.f32 %v1910, %v2018
        %v2020 = vand.u32 %v2019, 4294901760
        %v2021 = vsub.f32 %v2019, %v2020
        %v2022 = vand.u32 %v2021, 4294901760
        %2023 = vmatmul.mubr.f32.gmra.mrb[0].mxu0 %v2022
        %v2024 = vpop.f32.mrb[0].mxu0
        %v2025 = vadd.f32 %v1886, %v2024
        %v2026 = vpop.f32.mrb[0].mxu0
        %2027 = vmatprep.mubr.f32.mxu0 0.0
        %v2028 = vand.u32 %v1913, 4294901760
        %v2029 = vsub.f32 %v1913, %v2028
        %v2030 = vand.u32 %v2029, 4294901760
        %v2031 = vsub.f32 %v2029, %v2030
        %v2032 = vand.u32 %v2031, 4294901760
        %2033 = vmatmul.mubr.f32.gmra.mrb[0].mxu0 %v2032
        %v2034 = vpop.f32.mrb[0].mxu0
        %v2035 = vadd.f32 %v1891, %v2034
        %v2036 = vpop.f32.mrb[0].mxu0
        %2037 = vmatprep.mubr.f32.mxu0 0.0
        %v2038 = vand.u32 %v1916, 4294901760
        %v2039 = vsub.f32 %v1916, %v2038
        %v2040 = vand.u32 %v2039, 4294901760
        %v2041 = vsub.f32 %v2039, %v2040
        %v2042 = vand.u32 %v2041, 4294901760
        %2043 = vmatmul.mubr.f32.gmra.mrb[0].mxu0 %v2042
        %v2044 = vpop.f32.mrb[0].mxu0
        %v2045 = vadd.f32 %v1896, %v2044
        %v2046 = vpop.f32.mrb[0].mxu0
        %2047 = vmatprep.mubr.f32.mxu0 0.0
        %v2048 = vand.u32 %v1919, 4294901760
        %v2049 = vsub.f32 %v1919, %v2048
        %v2050 = vand.u32 %v2049, 4294901760
        %v2051 = vsub.f32 %v2049, %v2050
        %v2052 = vand.u32 %v2051, 4294901760
        %2053 = vmatmul.mubr.f32.gmra.mrb[0].mxu0 %v2052
        %v2054 = vpop.f32.mrb[0].mxu0
        %v2055 = vadd.f32 %v1901, %v2054
        %v2056 = vpop.f32.mrb[0].mxu0
        %2057 = vdwg.mxu0
        %2058 = vmatprep.subr.mxu0 0.0
        %v2059 = vand.u32 %v1849, 4294901760
        %v2060 = vsub.f32 %v1849, %v2059
        %v2061 = vand.u32 %v2060, 4294901760
        %v2062 = vsub.f32 %v2060, %v2061
        %v2063 = vand.u32 %v2062, 4294901760
        %2064 = vmatpush1.msra.mxu0 %v2063
        %2065 = vmatprep.subr.mxu0 0.0
        %v2066 = vand.u32 %v1850, 4294901760
        %v2067 = vsub.f32 %v1850, %v2066
        %v2068 = vand.u32 %v2067, 4294901760
        %v2069 = vsub.f32 %v2067, %v2068
        %v2070 = vand.u32 %v2069, 4294901760
        %2071 = vmatpush1.msra.mxu0 %v2070
        %2072 = vmatprep.subr.mxu0 0.0
        %v2073 = vand.u32 %v1851, 4294901760
        %v2074 = vsub.f32 %v1851, %v2073
        %v2075 = vand.u32 %v2074, 4294901760
        %v2076 = vsub.f32 %v2074, %v2075
        %v2077 = vand.u32 %v2076, 4294901760
        %2078 = vmatpush1.msra.mxu0 %v2077
        %2079 = vmatprep.subr.mxu0 0.0
        %v2080 = vand.u32 %v1852, 4294901760
        %v2081 = vsub.f32 %v1852, %v2080
        %v2082 = vand.u32 %v2081, 4294901760
        %v2083 = vsub.f32 %v2081, %v2082
        %v2084 = vand.u32 %v2083, 4294901760
        %2085 = vmatpush1.msra.mxu0 %v2084
        %2086 = vmatprep.subr.mxu0 0.0
        %v2087 = vand.u32 %v1853, 4294901760
        %v2088 = vsub.f32 %v1853, %v2087
        %v2089 = vand.u32 %v2088, 4294901760
        %v2090 = vsub.f32 %v2088, %v2089
        %v2091 = vand.u32 %v2090, 4294901760
        %2092 = vmatpush1.msra.mxu0 %v2091
        %2093 = vmatprep.subr.mxu0 0.0
        %v2094 = vand.u32 %v1854, 4294901760
        %v2095 = vsub.f32 %v1854, %v2094
        %v2096 = vand.u32 %v2095, 4294901760
        %v2097 = vsub.f32 %v2095, %v2096
        %v2098 = vand.u32 %v2097, 4294901760
        %2099 = vmatpush1.msra.mxu0 %v2098
        %2100 = vmatprep.subr.mxu0 0.0
        %v2101 = vand.u32 %v1855, 4294901760
        %v2102 = vsub.f32 %v1855, %v2101
        %v2103 = vand.u32 %v2102, 4294901760
        %v2104 = vsub.f32 %v2102, %v2103
        %v2105 = vand.u32 %v2104, 4294901760
        %2106 = vmatpush1.msra.mxu0 %v2105
        %2107 = vmatprep.subr.mxu0 0.0
        %v2108 = vand.u32 %v1856, 4294901760
        %v2109 = vsub.f32 %v1856, %v2108
        %v2110 = vand.u32 %v2109, 4294901760
        %v2111 = vsub.f32 %v2109, %v2110
        %v2112 = vand.u32 %v2111, 4294901760
        %2113 = vmatpush1.msra.mxu0 %v2112
        %2114 = vmatprep.subr.mxu0 0.0
        %v2115 = vand.u32 %v1857, 4294901760
        %v2116 = vsub.f32 %v1857, %v2115
        %v2117 = vand.u32 %v2116, 4294901760
        %v2118 = vsub.f32 %v2116, %v2117
        %v2119 = vand.u32 %v2118, 4294901760
        %2120 = vmatpush1.msra.mxu0 %v2119
        %2121 = vmatprep.subr.mxu0 0.0
        %v2122 = vand.u32 %v1858, 4294901760
        %v2123 = vsub.f32 %v1858, %v2122
        %v2124 = vand.u32 %v2123, 4294901760
        %v2125 = vsub.f32 %v2123, %v2124
        %v2126 = vand.u32 %v2125, 4294901760
        %2127 = vmatpush1.msra.mxu0 %v2126
        %2128 = vmatprep.subr.mxu0 0.0
        %v2129 = vand.u32 %v1859, 4294901760
        %v2130 = vsub.f32 %v1859, %v2129
        %v2131 = vand.u32 %v2130, 4294901760
        %v2132 = vsub.f32 %v2130, %v2131
        %v2133 = vand.u32 %v2132, 4294901760
        %2134 = vmatpush1.msra.mxu0 %v2133
        %2135 = vmatprep.subr.mxu0 0.0
        %v2136 = vand.u32 %v1860, 4294901760
        %v2137 = vsub.f32 %v1860, %v2136
        %v2138 = vand.u32 %v2137, 4294901760
        %v2139 = vsub.f32 %v2137, %v2138
        %v2140 = vand.u32 %v2139, 4294901760
        %2141 = vmatpush1.msra.mxu0 %v2140
        %2142 = vmatprep.subr.mxu0 0.0
        %2143 = vmatpush1.msra.mxu0 0.0
        %2144 = vmatprep.subr.mxu0 0.0
        %2145 = vmatpush1.msra.mxu0 0.0
        %2146 = vmatprep.subr.mxu0 0.0
        %2147 = vmatpush1.msra.mxu0 0.0
        %2148 = vmatprep.subr.mxu0 0.0
        %2149 = vmatpush1.msra.mxu0 0.0
        %2150 = vmatprep.subr.mxu0 0.0
        %2151 = vmatpush1.msra.mxu0 0.0
        %2152 = vmatprep.subr.mxu0 0.0
        %2153 = vmatpush1.msra.mxu0 0.0
        %2154 = vmatprep.subr.mxu0 0.0
        %2155 = vmatpush1.msra.mxu0 0.0
        %2156 = vmatprep.subr.mxu0 0.0
        %2157 = vmatpush1.msra.mxu0 0.0
        %2158 = vmatprep.subr.mxu0 0.0
        %2159 = vmatpush1.msra.mxu0 0.0
        %2160 = vmatprep.subr.mxu0 0.0
        %2161 = vmatpush1.msra.mxu0 0.0
        %2162 = vmatprep.subr.mxu0 0.0
        %2163 = vmatpush1.msra.mxu0 0.0
        %2164 = vmatprep.subr.mxu0 0.0
        %2165 = vmatpush1.msra.mxu0 0.0
        %2166 = vmatprep.subr.mxu0 0.0
        %2167 = vmatpush1.msra.mxu0 0.0
        %2168 = vmatprep.subr.mxu0 0.0
        %2169 = vmatpush1.msra.mxu0 0.0
        %2170 = vmatprep.subr.mxu0 0.0
        %2171 = vmatpush1.msra.mxu0 0.0
        %2172 = vmatprep.subr.mxu0 0.0
        %2173 = vmatpush1.msra.mxu0 0.0
        %2174 = vmatprep.subr.mxu0 0.0
        %2175 = vmatpush1.msra.mxu0 0.0
        %2176 = vmatprep.subr.mxu0 0.0
        %2177 = vmatpush1.msra.mxu0 0.0
        %2178 = vmatprep.subr.mxu0 0.0
        %2179 = vmatpush1.msra.mxu0 0.0
        %2180 = vmatprep.subr.mxu0 0.0
        %2181 = vmatpush1.msra.mxu0 0.0
        %2182 = vmatprep.mubr.f32.mxu0 0.0
        %v2183 = vand.u32 %v1904, 4294901760
        %2184 = vmatmul.mubr.f32.gmra.mrb[0].mxu0 %v2183
        %v2185 = vpop.f32.mrb[0].mxu0
        %v2186 = vadd.f32 %v2005, %v2185
        %v2187 = vpop.f32.mrb[0].mxu0
        %2188 = vmatprep.mubr.f32.mxu0 0.0
        %v2189 = vand.u32 %v1907, 4294901760
        %2190 = vmatmul.mubr.f32.gmra.mrb[0].mxu0 %v2189
        %v2191 = vpop.f32.mrb[0].mxu0
        %v2192 = vadd.f32 %v2015, %v2191
        %v2193 = vpop.f32.mrb[0].mxu0
        %2194 = vmatprep.mubr.f32.mxu0 0.0
        %v2195 = vand.u32 %v1910, 4294901760
        %2196 = vmatmul.mubr.f32.gmra.mrb[0].mxu0 %v2195
        %v2197 = vpop.f32.mrb[0].mxu0
        %v2198 = vadd.f32 %v2025, %v2197
        %v2199 = vpop.f32.mrb[0].mxu0
        %2200 = vmatprep.mubr.f32.mxu0 0.0
        %v2201 = vand.u32 %v1913, 4294901760
        %2202 = vmatmul.mubr.f32.gmra.mrb[0].mxu0 %v2201
        %v2203 = vpop.f32.mrb[0].mxu0
        %v2204 = vadd.f32 %v2035, %v2203
        %v2205 = vpop.f32.mrb[0].mxu0
        %2206 = vmatprep.mubr.f32.mxu0 0.0
        %v2207 = vand.u32 %v1916, 4294901760
        %2208 = vmatmul.mubr.f32.gmra.mrb[0].mxu0 %v2207
        %v2209 = vpop.f32.mrb[0].mxu0
        %v2210 = vadd.f32 %v2045, %v2209
        %v2211 = vpop.f32.mrb[0].mxu0
        %2212 = vmatprep.mubr.f32.mxu0 0.0
        %v2213 = vand.u32 %v1919, 4294901760
        %2214 = vmatmul.mubr.f32.gmra.mrb[0].mxu0 %v2213
        %v2215 = vpop.f32.mrb[0].mxu0
        %v2216 = vadd.f32 %v2055, %v2215
        %v2217 = vpop.f32.mrb[0].mxu0
        %2218 = vdwg.mxu0
        %2219 = vmatprep.subr.mxu0 0.0
        %v2220 = vand.u32 %v1849, 4294901760
        %v2221 = vsub.f32 %v1849, %v2220
        %2222 = vmatpush1.msra.mxu0 %v2221
        %2223 = vmatprep.subr.mxu0 0.0
        %v2224 = vand.u32 %v1850, 4294901760
        %v2225 = vsub.f32 %v1850, %v2224
        %2226 = vmatpush1.msra.mxu0 %v2225
        %2227 = vmatprep.subr.mxu0 0.0
        %v2228 = vand.u32 %v1851, 4294901760
        %v2229 = vsub.f32 %v1851, %v2228
        %2230 = vmatpush1.msra.mxu0 %v2229
        %2231 = vmatprep.subr.mxu0 0.0
        %v2232 = vand.u32 %v1852, 4294901760
        %v2233 = vsub.f32 %v1852, %v2232
        %2234 = vmatpush1.msra.mxu0 %v2233
        %2235 = vmatprep.subr.mxu0 0.0
        %v2236 = vand.u32 %v1853, 4294901760
        %v2237 = vsub.f32 %v1853, %v2236
        %2238 = vmatpush1.msra.mxu0 %v2237
        %2239 = vmatprep.subr.mxu0 0.0
        %v2240 = vand.u32 %v1854, 4294901760
        %v2241 = vsub.f32 %v1854, %v2240
        %2242 = vmatpush1.msra.mxu0 %v2241
        %2243 = vmatprep.subr.mxu0 0.0
        %v2244 = vand.u32 %v1855, 4294901760
        %v2245 = vsub.f32 %v1855, %v2244
        %2246 = vmatpush1.msra.mxu0 %v2245
        %2247 = vmatprep.subr.mxu0 0.0
        %v2248 = vand.u32 %v1856, 4294901760
        %v2249 = vsub.f32 %v1856, %v2248
        %2250 = vmatpush1.msra.mxu0 %v2249
        %2251 = vmatprep.subr.mxu0 0.0
        %v2252 = vand.u32 %v1857, 4294901760
        %v2253 = vsub.f32 %v1857, %v2252
        %2254 = vmatpush1.msra.mxu0 %v2253
        %2255 = vmatprep.subr.mxu0 0.0
        %v2256 = vand.u32 %v1858, 4294901760
        %v2257 = vsub.f32 %v1858, %v2256
        %2258 = vmatpush1.msra.mxu0 %v2257
        %2259 = vmatprep.subr.mxu0 0.0
        %v2260 = vand.u32 %v1859, 4294901760
        %v2261 = vsub.f32 %v1859, %v2260
        %2262 = vmatpush1.msra.mxu0 %v2261
        %2263 = vmatprep.subr.mxu0 0.0
        %v2264 = vand.u32 %v1860, 4294901760
        %v2265 = vsub.f32 %v1860, %v2264
        %2266 = vmatpush1.msra.mxu0 %v2265
        %2267 = vmatprep.subr.mxu0 0.0
        %2268 = vmatpush1.msra.mxu0 0.0
        %2269 = vmatprep.subr.mxu0 0.0
        %2270 = vmatpush1.msra.mxu0 0.0
        %2271 = vmatprep.subr.mxu0 0.0
        %2272 = vmatpush1.msra.mxu0 0.0
        %2273 = vmatprep.subr.mxu0 0.0
        %2274 = vmatpush1.msra.mxu0 0.0
        %2275 = vmatprep.subr.mxu0 0.0
        %2276 = vmatpush1.msra.mxu0 0.0
        %2277 = vmatprep.subr.mxu0 0.0
        %2278 = vmatpush1.msra.mxu0 0.0
        %2279 = vmatprep.subr.mxu0 0.0
        %2280 = vmatpush1.msra.mxu0 0.0
        %2281 = vmatprep.subr.mxu0 0.0
        %2282 = vmatpush1.msra.mxu0 0.0
        %2283 = vmatprep.subr.mxu0 0.0
        %2284 = vmatpush1.msra.mxu0 0.0
        %2285 = vmatprep.subr.mxu0 0.0
        %2286 = vmatpush1.msra.mxu0 0.0
        %2287 = vmatprep.subr.mxu0 0.0
        %2288 = vmatpush1.msra.mxu0 0.0
        %2289 = vmatprep.subr.mxu0 0.0
        %2290 = vmatpush1.msra.mxu0 0.0
        %2291 = vmatprep.subr.mxu0 0.0
        %2292 = vmatpush1.msra.mxu0 0.0
        %2293 = vmatprep.subr.mxu0 0.0
        %2294 = vmatpush1.msra.mxu0 0.0
        %2295 = vmatprep.subr.mxu0 0.0
        %2296 = vmatpush1.msra.mxu0 0.0
        %2297 = vmatprep.subr.mxu0 0.0
        %2298 = vmatpush1.msra.mxu0 0.0
        %2299 = vmatprep.subr.mxu0 0.0
        %2300 = vmatpush1.msra.mxu0 0.0
        %2301 = vmatprep.subr.mxu0 0.0
        %2302 = vmatpush1.msra.mxu0 0.0
        %2303 = vmatprep.subr.mxu0 0.0
        %2304 = vmatpush1.msra.mxu0 0.0
        %2305 = vmatprep.subr.mxu0 0.0
        %2306 = vmatpush1.msra.mxu0 0.0
        %2307 = vmatprep.mubr.f32.mxu0 0.0
        %v2308 = vand.u32 %v1904, 4294901760
        %v2309 = vsub.f32 %v1904, %v2308
        %2310 = vmatmul.mubr.f32.gmra.mrb[0].mxu0 %v2309
        %v2311 = vpop.f32.mrb[0].mxu0
        %v2312 = vadd.f32 %v2186, %v2311
        %v2313 = vpop.f32.mrb[0].mxu0
        %2314 = vmatprep.mubr.f32.mxu0 0.0
        %v2315 = vand.u32 %v1907, 4294901760
        %v2316 = vsub.f32 %v1907, %v2315
        %2317 = vmatmul.mubr.f32.gmra.mrb[0].mxu0 %v2316
        %v2318 = vpop.f32.mrb[0].mxu0
        %v2319 = vadd.f32 %v2192, %v2318
        %v2320 = vpop.f32.mrb[0].mxu0
        %2321 = vmatprep.mubr.f32.mxu0 0.0
        %v2322 = vand.u32 %v1910, 4294901760
        %v2323 = vsub.f32 %v1910, %v2322
        %2324 = vmatmul.mubr.f32.gmra.mrb[0].mxu0 %v2323
        %v2325 = vpop.f32.mrb[0].mxu0
        %v2326 = vadd.f32 %v2198, %v2325
        %v2327 = vpop.f32.mrb[0].mxu0
        %2328 = vmatprep.mubr.f32.mxu0 0.0
        %v2329 = vand.u32 %v1913, 4294901760
        %v2330 = vsub.f32 %v1913, %v2329
        %2331 = vmatmul.mubr.f32.gmra.mrb[0].mxu0 %v2330
        %v2332 = vpop.f32.mrb[0].mxu0
        %v2333 = vadd.f32 %v2204, %v2332
        %v2334 = vpop.f32.mrb[0].mxu0
        %2335 = vmatprep.mubr.f32.mxu0 0.0
        %v2336 = vand.u32 %v1916, 4294901760
        %v2337 = vsub.f32 %v1916, %v2336
        %2338 = vmatmul.mubr.f32.gmra.mrb[0].mxu0 %v2337
        %v2339 = vpop.f32.mrb[0].mxu0
        %v2340 = vadd.f32 %v2210, %v2339
        %v2341 = vpop.f32.mrb[0].mxu0
        %2342 = vmatprep.mubr.f32.mxu0 0.0
        %v2343 = vand.u32 %v1919, 4294901760
        %v2344 = vsub.f32 %v1919, %v2343
        %2345 = vmatmul.mubr.f32.gmra.mrb[0].mxu0 %v2344
        %v2346 = vpop.f32.mrb[0].mxu0
        %v2347 = vadd.f32 %v2216, %v2346
        %v2348 = vpop.f32.mrb[0].mxu0
        %2349 = vdwg.mxu0
        %2350 = vmatprep.subr.mxu0 0.0
        %v2351 = vand.u32 %v1849, 4294901760
        %2352 = vmatpush1.msra.mxu0 %v2351
        %2353 = vmatprep.subr.mxu0 0.0
        %v2354 = vand.u32 %v1850, 4294901760
        %2355 = vmatpush1.msra.mxu0 %v2354
        %2356 = vmatprep.subr.mxu0 0.0
        %v2357 = vand.u32 %v1851, 4294901760
        %2358 = vmatpush1.msra.mxu0 %v2357
        %2359 = vmatprep.subr.mxu0 0.0
        %v2360 = vand.u32 %v1852, 4294901760
        %2361 = vmatpush1.msra.mxu0 %v2360
        %2362 = vmatprep.subr.mxu0 0.0
        %v2363 = vand.u32 %v1853, 4294901760
        %2364 = vmatpush1.msra.mxu0 %v2363
        %2365 = vmatprep.subr.mxu0 0.0
        %v2366 = vand.u32 %v1854, 4294901760
        %2367 = vmatpush1.msra.mxu0 %v2366
        %2368 = vmatprep.subr.mxu0 0.0
        %v2369 = vand.u32 %v1855, 4294901760
        %2370 = vmatpush1.msra.mxu0 %v2369
        %2371 = vmatprep.subr.mxu0 0.0
        %v2372 = vand.u32 %v1856, 4294901760
        %2373 = vmatpush1.msra.mxu0 %v2372
        %2374 = vmatprep.subr.mxu0 0.0
        %v2375 = vand.u32 %v1857, 4294901760
        %2376 = vmatpush1.msra.mxu0 %v2375
        %2377 = vmatprep.subr.mxu0 0.0
        %v2378 = vand.u32 %v1858, 4294901760
        %2379 = vmatpush1.msra.mxu0 %v2378
        %2380 = vmatprep.subr.mxu0 0.0
        %v2381 = vand.u32 %v1859, 4294901760
        %2382 = vmatpush1.msra.mxu0 %v2381
        %2383 = vmatprep.subr.mxu0 0.0
        %v2384 = vand.u32 %v1860, 4294901760
        %2385 = vmatpush1.msra.mxu0 %v2384
        %2386 = vmatprep.subr.mxu0 0.0
        %2387 = vmatpush1.msra.mxu0 0.0
        %2388 = vmatprep.subr.mxu0 0.0
        %2389 = vmatpush1.msra.mxu0 0.0
        %2390 = vmatprep.subr.mxu0 0.0
        %2391 = vmatpush1.msra.mxu0 0.0
        %2392 = vmatprep.subr.mxu0 0.0
        %2393 = vmatpush1.msra.mxu0 0.0
        %2394 = vmatprep.subr.mxu0 0.0
        %2395 = vmatpush1.msra.mxu0 0.0
        %2396 = vmatprep.subr.mxu0 0.0
        %2397 = vmatpush1.msra.mxu0 0.0
        %2398 = vmatprep.subr.mxu0 0.0
        %2399 = vmatpush1.msra.mxu0 0.0
        %2400 = vmatprep.subr.mxu0 0.0
        %2401 = vmatpush1.msra.mxu0 0.0
        %2402 = vmatprep.subr.mxu0 0.0
        %2403 = vmatpush1.msra.mxu0 0.0
        %2404 = vmatprep.subr.mxu0 0.0
        %2405 = vmatpush1.msra.mxu0 0.0
        %2406 = vmatprep.subr.mxu0 0.0
        %2407 = vmatpush1.msra.mxu0 0.0
        %2408 = vmatprep.subr.mxu0 0.0
        %2409 = vmatpush1.msra.mxu0 0.0
        %2410 = vmatprep.subr.mxu0 0.0
        %2411 = vmatpush1.msra.mxu0 0.0
        %2412 = vmatprep.subr.mxu0 0.0
        %2413 = vmatpush1.msra.mxu0 0.0
        %2414 = vmatprep.subr.mxu0 0.0
        %2415 = vmatpush1.msra.mxu0 0.0
        %2416 = vmatprep.subr.mxu0 0.0
        %2417 = vmatpush1.msra.mxu0 0.0
        %2418 = vmatprep.subr.mxu0 0.0
        %2419 = vmatpush1.msra.mxu0 0.0
        %2420 = vmatprep.subr.mxu0 0.0
        %2421 = vmatpush1.msra.mxu0 0.0
        %2422 = vmatprep.subr.mxu0 0.0
        %2423 = vmatpush1.msra.mxu0 0.0
        %2424 = vmatprep.subr.mxu0 0.0
        %2425 = vmatpush1.msra.mxu0 0.0
        %2426 = vmatprep.mubr.f32.mxu0 0.0
        %v2427 = vand.u32 %v1904, 4294901760
        %v2428 = vsub.f32 %v1904, %v2427
        %v2429 = vand.u32 %v2428, 4294901760
        %2430 = vmatmul.mubr.f32.gmra.mrb[0].mxu0 %v2429
        %v2431 = vpop.f32.mrb[0].mxu0
        %v2432 = vadd.f32 %v2312, %v2431
        %v2433 = vpop.f32.mrb[0].mxu0
        %2434 = vmatprep.mubr.f32.mxu0 0.0
        %v2435 = vand.u32 %v1907, 4294901760
        %v2436 = vsub.f32 %v1907, %v2435
        %v2437 = vand.u32 %v2436, 4294901760
        %2438 = vmatmul.mubr.f32.gmra.mrb[0].mxu0 %v2437
        %v2439 = vpop.f32.mrb[0].mxu0
        %v2440 = vadd.f32 %v2319, %v2439
        %v2441 = vpop.f32.mrb[0].mxu0
        %2442 = vmatprep.mubr.f32.mxu0 0.0
        %v2443 = vand.u32 %v1910, 4294901760
        %v2444 = vsub.f32 %v1910, %v2443
        %v2445 = vand.u32 %v2444, 4294901760
        %2446 = vmatmul.mubr.f32.gmra.mrb[0].mxu0 %v2445
        %v2447 = vpop.f32.mrb[0].mxu0
        %v2448 = vadd.f32 %v2326, %v2447
        %v2449 = vpop.f32.mrb[0].mxu0
        %2450 = vmatprep.mubr.f32.mxu0 0.0
        %v2451 = vand.u32 %v1913, 4294901760
        %v2452 = vsub.f32 %v1913, %v2451
        %v2453 = vand.u32 %v2452, 4294901760
        %2454 = vmatmul.mubr.f32.gmra.mrb[0].mxu0 %v2453
        %v2455 = vpop.f32.mrb[0].mxu0
        %v2456 = vadd.f32 %v2333, %v2455
        %v2457 = vpop.f32.mrb[0].mxu0
        %2458 = vmatprep.mubr.f32.mxu0 0.0
        %v2459 = vand.u32 %v1916, 4294901760
        %v2460 = vsub.f32 %v1916, %v2459
        %v2461 = vand.u32 %v2460, 4294901760
        %2462 = vmatmul.mubr.f32.gmra.mrb[0].mxu0 %v2461
        %v2463 = vpop.f32.mrb[0].mxu0
        %v2464 = vadd.f32 %v2340, %v2463
        %v2465 = vpop.f32.mrb[0].mxu0
        %2466 = vmatprep.mubr.f32.mxu0 0.0
        %v2467 = vand.u32 %v1919, 4294901760
        %v2468 = vsub.f32 %v1919, %v2467
        %v2469 = vand.u32 %v2468, 4294901760
        %2470 = vmatmul.mubr.f32.gmra.mrb[0].mxu0 %v2469
        %v2471 = vpop.f32.mrb[0].mxu0
        %v2472 = vadd.f32 %v2347, %v2471
        %v2473 = vpop.f32.mrb[0].mxu0
        %2474 = vdwg.mxu0
        %2475 = vmatprep.subr.mxu0 0.0
        %v2476 = vand.u32 %v1849, 4294901760
        %v2477 = vsub.f32 %v1849, %v2476
        %v2478 = vand.u32 %v2477, 4294901760
        %2479 = vmatpush1.msra.mxu0 %v2478
        %2480 = vmatprep.subr.mxu0 0.0
        %v2481 = vand.u32 %v1850, 4294901760
        %v2482 = vsub.f32 %v1850, %v2481
        %v2483 = vand.u32 %v2482, 4294901760
        %2484 = vmatpush1.msra.mxu0 %v2483
        %2485 = vmatprep.subr.mxu0 0.0
        %v2486 = vand.u32 %v1851, 4294901760
        %v2487 = vsub.f32 %v1851, %v2486
        %v2488 = vand.u32 %v2487, 4294901760
        %2489 = vmatpush1.msra.mxu0 %v2488
        %2490 = vmatprep.subr.mxu0 0.0
        %v2491 = vand.u32 %v1852, 4294901760
        %v2492 = vsub.f32 %v1852, %v2491
        %v2493 = vand.u32 %v2492, 4294901760
        %2494 = vmatpush1.msra.mxu0 %v2493
        %2495 = vmatprep.subr.mxu0 0.0
        %v2496 = vand.u32 %v1853, 4294901760
        %v2497 = vsub.f32 %v1853, %v2496
        %v2498 = vand.u32 %v2497, 4294901760
        %2499 = vmatpush1.msra.mxu0 %v2498
        %2500 = vmatprep.subr.mxu0 0.0
        %v2501 = vand.u32 %v1854, 4294901760
        %v2502 = vsub.f32 %v1854, %v2501
        %v2503 = vand.u32 %v2502, 4294901760
        %2504 = vmatpush1.msra.mxu0 %v2503
        %2505 = vmatprep.subr.mxu0 0.0
        %v2506 = vand.u32 %v1855, 4294901760
        %v2507 = vsub.f32 %v1855, %v2506
        %v2508 = vand.u32 %v2507, 4294901760
        %2509 = vmatpush1.msra.mxu0 %v2508
        %2510 = vmatprep.subr.mxu0 0.0
        %v2511 = vand.u32 %v1856, 4294901760
        %v2512 = vsub.f32 %v1856, %v2511
        %v2513 = vand.u32 %v2512, 4294901760
        %2514 = vmatpush1.msra.mxu0 %v2513
        %2515 = vmatprep.subr.mxu0 0.0
        %v2516 = vand.u32 %v1857, 4294901760
        %v2517 = vsub.f32 %v1857, %v2516
        %v2518 = vand.u32 %v2517, 4294901760
        %2519 = vmatpush1.msra.mxu0 %v2518
        %2520 = vmatprep.subr.mxu0 0.0
        %v2521 = vand.u32 %v1858, 4294901760
        %v2522 = vsub.f32 %v1858, %v2521
        %v2523 = vand.u32 %v2522, 4294901760
        %2524 = vmatpush1.msra.mxu0 %v2523
        %2525 = vmatprep.subr.mxu0 0.0
        %v2526 = vand.u32 %v1859, 4294901760
        %v2527 = vsub.f32 %v1859, %v2526
        %v2528 = vand.u32 %v2527, 4294901760
        %2529 = vmatpush1.msra.mxu0 %v2528
        %2530 = vmatprep.subr.mxu0 0.0
        %v2531 = vand.u32 %v1860, 4294901760
        %v2532 = vsub.f32 %v1860, %v2531
        %v2533 = vand.u32 %v2532, 4294901760
        %2534 = vmatpush1.msra.mxu0 %v2533
        %2535 = vmatprep.subr.mxu0 0.0
        %2536 = vmatpush1.msra.mxu0 0.0
        %2537 = vmatprep.subr.mxu0 0.0
        %2538 = vmatpush1.msra.mxu0 0.0
        %2539 = vmatprep.subr.mxu0 0.0
        %2540 = vmatpush1.msra.mxu0 0.0
        %2541 = vmatprep.subr.mxu0 0.0
        %2542 = vmatpush1.msra.mxu0 0.0
        %2543 = vmatprep.subr.mxu0 0.0
        %2544 = vmatpush1.msra.mxu0 0.0
        %2545 = vmatprep.subr.mxu0 0.0
        %2546 = vmatpush1.msra.mxu0 0.0
        %2547 = vmatprep.subr.mxu0 0.0
        %2548 = vmatpush1.msra.mxu0 0.0
        %2549 = vmatprep.subr.mxu0 0.0
        %2550 = vmatpush1.msra.mxu0 0.0
        %2551 = vmatprep.subr.mxu0 0.0
        %2552 = vmatpush1.msra.mxu0 0.0
        %2553 = vmatprep.subr.mxu0 0.0
        %2554 = vmatpush1.msra.mxu0 0.0
        %2555 = vmatprep.subr.mxu0 0.0
        %2556 = vmatpush1.msra.mxu0 0.0
        %2557 = vmatprep.subr.mxu0 0.0
        %2558 = vmatpush1.msra.mxu0 0.0
        %2559 = vmatprep.subr.mxu0 0.0
        %2560 = vmatpush1.msra.mxu0 0.0
        %2561 = vmatprep.subr.mxu0 0.0
        %2562 = vmatpush1.msra.mxu0 0.0
        %2563 = vmatprep.subr.mxu0 0.0
        %2564 = vmatpush1.msra.mxu0 0.0
        %2565 = vmatprep.subr.mxu0 0.0
        %2566 = vmatpush1.msra.mxu0 0.0
        %2567 = vmatprep.subr.mxu0 0.0
        %2568 = vmatpush1.msra.mxu0 0.0
        %2569 = vmatprep.subr.mxu0 0.0
        %2570 = vmatpush1.msra.mxu0 0.0
        %2571 = vmatprep.subr.mxu0 0.0
        %2572 = vmatpush1.msra.mxu0 0.0
        %2573 = vmatprep.subr.mxu0 0.0
        %2574 = vmatpush1.msra.mxu0 0.0
        %2575 = vmatprep.mubr.f32.mxu0 0.0
        %v2576 = vand.u32 %v1904, 4294901760
        %2577 = vmatmul.mubr.f32.gmra.mrb[0].mxu0 %v2576
        %v2578 = vpop.f32.mrb[0].mxu0
        %v2579 = vadd.f32 %v2432, %v2578
        %v2580 = vpop.f32.mrb[0].mxu0
        %2581 = vmatprep.mubr.f32.mxu0 0.0
        %v2582 = vand.u32 %v1907, 4294901760
        %2583 = vmatmul.mubr.f32.gmra.mrb[0].mxu0 %v2582
        %v2584 = vpop.f32.mrb[0].mxu0
        %v2585 = vadd.f32 %v2440, %v2584
        %v2586 = vpop.f32.mrb[0].mxu0
        %2587 = vmatprep.mubr.f32.mxu0 0.0
        %v2588 = vand.u32 %v1910, 4294901760
        %2589 = vmatmul.mubr.f32.gmra.mrb[0].mxu0 %v2588
        %v2590 = vpop.f32.mrb[0].mxu0
        %v2591 = vadd.f32 %v2448, %v2590
        %v2592 = vpop.f32.mrb[0].mxu0
        %2593 = vmatprep.mubr.f32.mxu0 0.0
        %v2594 = vand.u32 %v1913, 4294901760
        %2595 = vmatmul.mubr.f32.gmra.mrb[0].mxu0 %v2594
        %v2596 = vpop.f32.mrb[0].mxu0
        %v2597 = vadd.f32 %v2456, %v2596
        %v2598 = vpop.f32.mrb[0].mxu0
        %2599 = vmatprep.mubr.f32.mxu0 0.0
        %v2600 = vand.u32 %v1916, 4294901760
        %2601 = vmatmul.mubr.f32.gmra.mrb[0].mxu0 %v2600
        %v2602 = vpop.f32.mrb[0].mxu0
        %v2603 = vadd.f32 %v2464, %v2602
        %v2604 = vpop.f32.mrb[0].mxu0
        %2605 = vmatprep.mubr.f32.mxu0 0.0
        %v2606 = vand.u32 %v1919, 4294901760
        %2607 = vmatmul.mubr.f32.gmra.mrb[0].mxu0 %v2606
        %v2608 = vpop.f32.mrb[0].mxu0
        %v2609 = vadd.f32 %v2472, %v2608
        %v2610 = vpop.f32.mrb[0].mxu0
        %2611 = vdwg.mxu0
        %2612 = vmatprep.subr.mxu0 0.0
        %v2613 = vand.u32 %v1849, 4294901760
        %2614 = vmatpush1.msra.mxu0 %v2613
        %2615 = vmatprep.subr.mxu0 0.0
        %v2616 = vand.u32 %v1850, 4294901760
        %2617 = vmatpush1.msra.mxu0 %v2616
        %2618 = vmatprep.subr.mxu0 0.0
        %v2619 = vand.u32 %v1851, 4294901760
        %2620 = vmatpush1.msra.mxu0 %v2619
        %2621 = vmatprep.subr.mxu0 0.0
        %v2622 = vand.u32 %v1852, 4294901760
        %2623 = vmatpush1.msra.mxu0 %v2622
        %2624 = vmatprep.subr.mxu0 0.0
        %v2625 = vand.u32 %v1853, 4294901760
        %2626 = vmatpush1.msra.mxu0 %v2625
        %2627 = vmatprep.subr.mxu0 0.0
        %v2628 = vand.u32 %v1854, 4294901760
        %2629 = vmatpush1.msra.mxu0 %v2628
        %2630 = vmatprep.subr.mxu0 0.0
        %v2631 = vand.u32 %v1855, 4294901760
        %2632 = vmatpush1.msra.mxu0 %v2631
        %2633 = vmatprep.subr.mxu0 0.0
        %v2634 = vand.u32 %v1856, 4294901760
        %2635 = vmatpush1.msra.mxu0 %v2634
        %2636 = vmatprep.subr.mxu0 0.0
        %v2637 = vand.u32 %v1857, 4294901760
        %2638 = vmatpush1.msra.mxu0 %v2637
        %2639 = vmatprep.subr.mxu0 0.0
        %v2640 = vand.u32 %v1858, 4294901760
        %2641 = vmatpush1.msra.mxu0 %v2640
        %2642 = vmatprep.subr.mxu0 0.0
        %v2643 = vand.u32 %v1859, 4294901760
        %2644 = vmatpush1.msra.mxu0 %v2643
        %2645 = vmatprep.subr.mxu0 0.0
        %v2646 = vand.u32 %v1860, 4294901760
        %2647 = vmatpush1.msra.mxu0 %v2646
        %2648 = vmatprep.subr.mxu0 0.0
        %2649 = vmatpush1.msra.mxu0 0.0
        %2650 = vmatprep.subr.mxu0 0.0
        %2651 = vmatpush1.msra.mxu0 0.0
        %2652 = vmatprep.subr.mxu0 0.0
        %2653 = vmatpush1.msra.mxu0 0.0
        %2654 = vmatprep.subr.mxu0 0.0
        %2655 = vmatpush1.msra.mxu0 0.0
        %2656 = vmatprep.subr.mxu0 0.0
        %2657 = vmatpush1.msra.mxu0 0.0
        %2658 = vmatprep.subr.mxu0 0.0
        %2659 = vmatpush1.msra.mxu0 0.0
        %2660 = vmatprep.subr.mxu0 0.0
        %2661 = vmatpush1.msra.mxu0 0.0
        %2662 = vmatprep.subr.mxu0 0.0
        %2663 = vmatpush1.msra.mxu0 0.0
        %2664 = vmatprep.subr.mxu0 0.0
        %2665 = vmatpush1.msra.mxu0 0.0
        %2666 = vmatprep.subr.mxu0 0.0
        %2667 = vmatpush1.msra.mxu0 0.0
        %2668 = vmatprep.subr.mxu0 0.0
        %2669 = vmatpush1.msra.mxu0 0.0
        %2670 = vmatprep.subr.mxu0 0.0
        %2671 = vmatpush1.msra.mxu0 0.0
        %2672 = vmatprep.subr.mxu0 0.0
        %2673 = vmatpush1.msra.mxu0 0.0
        %2674 = vmatprep.subr.mxu0 0.0
        %2675 = vmatpush1.msra.mxu0 0.0
        %2676 = vmatprep.subr.mxu0 0.0
        %2677 = vmatpush1.msra.mxu0 0.0
        %2678 = vmatprep.subr.mxu0 0.0
        %2679 = vmatpush1.msra.mxu0 0.0
        %2680 = vmatprep.subr.mxu0 0.0
        %2681 = vmatpush1.msra.mxu0 0.0
        %2682 = vmatprep.subr.mxu0 0.0
        %2683 = vmatpush1.msra.mxu0 0.0
        %2684 = vmatprep.subr.mxu0 0.0
        %2685 = vmatpush1.msra.mxu0 0.0
        %2686 = vmatprep.subr.mxu0 0.0
        %2687 = vmatpush1.msra.mxu0 0.0
        %2688 = vmatprep.mubr.f32.mxu0 0.0
        %v2689 = vand.u32 %v1904, 4294901760
        %2690 = vmatmul.mubr.f32.gmra.mrb[0].mxu0 %v2689
        %v2691 = vpop.f32.mrb[0].mxu0
        %v2692 = vadd.f32 %v2579, %v2691
        %v2693 = vpop.f32.mrb[0].mxu0
        %2694 = vmatprep.mubr.f32.mxu0 0.0
        %v2695 = vand.u32 %v1907, 4294901760
        %2696 = vmatmul.mubr.f32.gmra.mrb[0].mxu0 %v2695
        %v2697 = vpop.f32.mrb[0].mxu0
        %v2698 = vadd.f32 %v2585, %v2697
        %v2699 = vpop.f32.mrb[0].mxu0
        %2700 = vmatprep.mubr.f32.mxu0 0.0
        %v2701 = vand.u32 %v1910, 4294901760
        %2702 = vmatmul.mubr.f32.gmra.mrb[0].mxu0 %v2701
        %v2703 = vpop.f32.mrb[0].mxu0
        %v2704 = vadd.f32 %v2591, %v2703
        %v2705 = vpop.f32.mrb[0].mxu0
        %2706 = vmatprep.mubr.f32.mxu0 0.0
        %v2707 = vand.u32 %v1913, 4294901760
        %2708 = vmatmul.mubr.f32.gmra.mrb[0].mxu0 %v2707
        %v2709 = vpop.f32.mrb[0].mxu0
        %v2710 = vadd.f32 %v2597, %v2709
        %v2711 = vpop.f32.mrb[0].mxu0
        %2712 = vmatprep.mubr.f32.mxu0 0.0
        %v2713 = vand.u32 %v1916, 4294901760
        %2714 = vmatmul.mubr.f32.gmra.mrb[0].mxu0 %v2713
        %v2715 = vpop.f32.mrb[0].mxu0
        %v2716 = vadd.f32 %v2603, %v2715
        %v2717 = vpop.f32.mrb[0].mxu0
        %2718 = vmatprep.mubr.f32.mxu0 0.0
        %v2719 = vand.u32 %v1919, 4294901760
        %2720 = vmatmul.mubr.f32.gmra.mrb[0].mxu0 %v2719
        %v2721 = vpop.f32.mrb[0].mxu0
        %v2722 = vadd.f32 %v2609, %v2721
        %v2723 = vpop.f32.mrb[0].mxu0
        %2724 = vdwg.mxu0
        %v2725 = vmul.f32 %v2692, %v2704
        %v2726 = vmul.f32 %v2698, %v2710
        %v2727 = vmul.f32 %v2725, %v2716
        %v2728 = vmul.f32 %v2726, %v2722
        %v2729 = vadd.f32 %v2727, %v2728
        %v2730 = vrot.slane %v2729, 4
        %v2731 = vadd.f32 %v2729, %v2730
        %v2732 = vrot.slane %v2731, 2
        %v2733 = vadd.f32 %v2731, %v2732
        %v2734 = vrot.slane %v2733, 1
        %v2735 = vadd.f32 %v2733, %v2734
        %s2736 = sld [smem:[#allocation2]]
        %s2737 = sld [smem:[#allocation3]]
        %v2738 = vstv %s2736
        %v2739 = vmul.f32 %v2735, %v2738
        %v2740 = vstv %s2737
        %v2741 = vadd.f32 %v2739, %v2740
        %2742 = vst [vmem:[%s324] sm:$0x1] %v2741
        %s2743 = sand.u32 %s227, 1
        %s2744 = scalar_lea.sflag [#allocation5], %s2743
        %s2745 = sand.u32 %s227, 1
        %s2746 = scalar_lea.vmem [#allocation4], %s2745
        // Predicated region
        $region57: #{tpu_custom_call.1} parent=55 // pred_check
          %p2747 = pneg %p237
        $region58: #{tpu_custom_call.1} parent=55 // pred_check_branch
          %2749 = sbr.rel (%p2747) target = $region60
        $region59: #{tpu_custom_call.1} parent=55 // pred_region
          %s2751 = ssub.s32 16, 16
          %2752 = vsyncadd %s2744, %s2751
          %s2753 = smul.addr %s25, 16
          %s2754 = scalar_lea.hbm %s9, %s2753
          %s2756 = sshll.u32 %s2746, 4
          %s2757 = int_to_ptr.vmem [resolvable:$true] %s2756
          %2759 = dma.vmem_to_hbm [thread:$0]  %s2757, 16, %s2754, %s2744
        $region60: #{tpu_custom_call.1} parent=55 // pred_fallthru
          _
      $region56: #{tpu_custom_call.1} parent=5 // pred_fallthru
        _
      %p2760 = scmp.le.s32.totalorder 2, %s20
      // Predicated region
      $region61: #{tpu_custom_call.1} parent=5 // pred_check
        %p2761 = pneg %p2760
      $region62: #{tpu_custom_call.1} parent=5 // pred_check_branch
        %2763 = sbr.rel (%p2761) target = $region64
      $region63: #{tpu_custom_call.1} parent=5 // pred_region
        %s2764 = ssub.s32 %s20, 2
        // Predicated region
        $region65: #{tpu_custom_call.1} parent=63 // pred_check
          %p2765 = pneg %p243
        $region66: #{tpu_custom_call.1} parent=63 // pred_check_branch
          %2767 = sbr.rel (%p2765) target = $region68
        $region67: #{tpu_custom_call.1} parent=63 // pred_region
          %s2768 = sand.u32 %s228, 1
          %s2769 = scalar_lea.sflag [#allocation5], %s2768
          %s2770 = sand.u32 %s228, 1
          %s2771 = scalar_lea.vmem [#allocation4], %s2770
          %2772 = dma.done %s2769, 16
        $region68: #{tpu_custom_call.1} parent=63 // pred_fallthru
          _
      $region64: #{tpu_custom_call.1} parent=5 // pred_fallthru
        _
    $region6: #{tpu_custom_call.1} parent=1 // loop_footer
      %s24 = sadd.s32 1, %s20
    $region7: #{tpu_custom_call.1} parent=1 // loop_footer_branch
      %19 = sbr.rel target = $region3
    $region8: #{tpu_custom_call.1} parent=1 // loop_exit
      _
    %2773 = vsyncpa [#allocation5], 1
    %s2774 = scalar_lea.sflag [#allocation5], 1
    %2775 = vsyncpa %s2774, 1

</llo_original>
